<compile_context>
chip_gen: v5e
topology: v5e:2x2
jax: 0.10.0
libtpu: 0.0.40
codegen_flags: <defaults>
</compile_context>

<pallas_src>
import functools

import numpy as np
import jax
import jax.numpy as jnp
from jax import lax
from jax.experimental import pallas as pl
from jax.experimental.pallas import tpu as pltpu

BN_EPS = 1e-5


# ----------------------------- hardware-aware sizing --------------------------


@functools.lru_cache(maxsize=1)
def _tpu_vmem_capacity_bytes():
    try:
        info = pltpu.get_tpu_info()
        cap = getattr(info, "vmem_capacity_bytes", None)
        if cap:
            return int(cap)
    except Exception:
        pass
    return 64 << 20  # conservative fallback (v7x per-TC VMEM)


def _vmem_limit(blocks, headroom=8 << 20):
    """blocks: iterable of (shape, dtype) VMEM blocks (double-buffered by the pipeline)."""
    need = headroom
    for shape, dtype in blocks:
        need += 2 * int(np.prod(shape)) * np.dtype(dtype).itemsize
    cap = max(int(0.75 * _tpu_vmem_capacity_bytes()), 32 << 20)
    return int(min(max(need, 32 << 20), cap))


def _pick_batch_tile(batch, requested, max_tile):
    if requested is not None and batch % requested == 0:
        return requested
    for step in (16, 8):  # prefer multiples of 16 (bf16 sublane packing)
        if batch % step == 0:
            tb = min(max_tile, batch)
            tb -= tb % step
            while batch % tb != 0:
                tb -= step
            return tb
    # Ragged batch: single whole-batch block (see TODO above).
    return batch


def _fused_fits(batch, in_dim, hidden, out_dim, vmem_cap):
    maxd = max(in_dim, hidden, out_dim)
    weights = 2 * (in_dim * hidden + hidden * hidden + hidden * out_dim)
    acts = 4 * batch * (in_dim + 4 * maxd + out_dim)  # rough live-activation bound
    return (weights + acts + (16 << 20)) <= int(0.6 * vmem_cap)


# ----------------------------- kernels ---------------------------------------


def linear_stats_kernel(x_ref, w_ref, y_ref, st_ref):
    """y = bf16(x) @ W (f32 acc); store y in bf16; emit packed per-tile [sum; sumsq]."""
    y = jnp.dot(x_ref[...].astype(jnp.bfloat16), w_ref[...],
                preferred_element_type=jnp.float32)
    y_ref[...] = y.astype(y_ref.dtype)
    s = jnp.sum(y, axis=0, keepdims=True)        # (1, Dout)
    ss = jnp.sum(y * y, axis=0, keepdims=True)   # (1, Dout)
    st_ref[...] = jnp.concatenate([s, ss], axis=0)[None, :, :]   # (1, 2, Dout)


def bn_relu_linear_stats_kernel(h_ref, sc_ref, sh_ref, w_ref, y_ref, st_ref):
    """Folded BN (precomputed scale/shift) -> ReLU -> Linear; emit next layer's stats."""
    a = jnp.maximum(h_ref[...].astype(jnp.float32) * sc_ref[...] + sh_ref[...], 0.0)
    y = jnp.dot(a.astype(jnp.bfloat16), w_ref[...],
                preferred_element_type=jnp.float32)
    y_ref[...] = y.astype(y_ref.dtype)
    s = jnp.sum(y, axis=0, keepdims=True)
    ss = jnp.sum(y * y, axis=0, keepdims=True)
    st_ref[...] = jnp.concatenate([s, ss], axis=0)[None, :, :]


def bn_finalize_kernel(h_ref, sc_ref, sh_ref, o_ref):
    """Final BN (no ReLU on the output fc)."""
    o_ref[...] = (h_ref[...].astype(jnp.float32) * sc_ref[...]
                  + sh_ref[...]).astype(o_ref.dtype)


def fused_mlp_kernel(inv_b, x_ref, w1_ref, g1_ref, be1_ref, w2_ref, g2_ref, be2_ref,
                     w3_ref, g3_ref, be3_ref, o_ref):
    """Whole network in one kernel; activations never leave VMEM."""
    def bn(h, g, be):
        mean = jnp.sum(h, axis=0, keepdims=True) * inv_b
        var = jnp.sum(h * h, axis=0, keepdims=True) * inv_b - mean * mean
        scale = g * lax.rsqrt(var + BN_EPS)
        return h * scale + (be - mean * scale)

    h1 = jnp.dot(x_ref[...].astype(jnp.bfloat16), w1_ref[...],
                 preferred_element_type=jnp.float32)
    a1 = jnp.maximum(bn(h1, g1_ref[...], be1_ref[...]), 0.0)
    h2 = jnp.dot(a1.astype(jnp.bfloat16), w2_ref[...],
                 preferred_element_type=jnp.float32)
    a2 = jnp.maximum(bn(h2, g2_ref[...], be2_ref[...]), 0.0)
    h3 = jnp.dot(a2.astype(jnp.bfloat16), w3_ref[...],
                 preferred_element_type=jnp.float32)
    o_ref[...] = bn(h3, g3_ref[...], be3_ref[...]).astype(o_ref.dtype)


# ----------------------------- call wrappers ----------------------------------


def _fold_bn(stats, gamma, beta, batch):
    """Reduce (nb, 2, D) packed partials -> folded (1, D) scale/shift (tiny JAX op)."""
    tot = jnp.sum(stats, axis=0)                    # (2, D)
    mean = tot[0:1, :] * (1.0 / batch)
    var = tot[1:2, :] * (1.0 / batch) - mean * mean  # biased batch variance
    scale = gamma * lax.rsqrt(var + BN_EPS)
    shift = beta - mean * scale
    return scale, shift


def _linear_stats(x, w, tb):
    batch, din = x.shape
    dout = w.shape[1]
    nb = batch // tb
    flops = 2 * batch * din * dout
    bytes_accessed = (x.size * x.dtype.itemsize + w.size * w.dtype.itemsize
                      + batch * dout * 2 + nb * 2 * dout * 4)
    vmem = _vmem_limit([((tb, din), x.dtype), ((din, dout), w.dtype),
                        ((tb, dout), jnp.bfloat16), ((1, 2, dout), jnp.float32)])
    return pl.pallas_call(
        linear_stats_kernel,
        grid=(nb,),
        in_specs=[pl.BlockSpec((tb, din), lambda i: (i, 0)),
                  pl.BlockSpec((din, dout), lambda i: (0, 0))],
        out_specs=(pl.BlockSpec((tb, dout), lambda i: (i, 0)),
                   pl.BlockSpec((1, 2, dout), lambda i: (i, 0, 0))),
        out_shape=(jax.ShapeDtypeStruct((batch, dout), jnp.bfloat16),
                   jax.ShapeDtypeStruct((nb, 2, dout), jnp.float32)),
        compiler_params=pltpu.CompilerParams(
            dimension_semantics=("parallel",), vmem_limit_bytes=vmem),
        cost_estimate=pl.CostEstimate(flops=flops, transcendentals=0,
                                      bytes_accessed=bytes_accessed),
    )(x, w)


def _bn_relu_linear_stats(h, scale, shift, w, tb):
    batch, dh = h.shape
    dout = w.shape[1]
    nb = batch // tb
    flops = 2 * batch * dh * dout + 3 * batch * dh
    bytes_accessed = (h.size * 2 + (scale.size + shift.size) * 4
                      + w.size * w.dtype.itemsize
                      + batch * dout * 2 + nb * 2 * dout * 4)
    vmem = _vmem_limit([((tb, dh), jnp.bfloat16),
                        ((1, dh), jnp.float32), ((1, dh), jnp.float32),
                        ((dh, dout), w.dtype),
                        ((tb, dout), jnp.bfloat16), ((1, 2, dout), jnp.float32)])
    return pl.pallas_call(
        bn_relu_linear_stats_kernel,
        grid=(nb,),
        in_specs=[pl.BlockSpec((tb, dh), lambda i: (i, 0)),
                  pl.BlockSpec((1, dh), lambda i: (0, 0)),
                  pl.BlockSpec((1, dh), lambda i: (0, 0)),
                  pl.BlockSpec((dh, dout), lambda i: (0, 0))],
        out_specs=(pl.BlockSpec((tb, dout), lambda i: (i, 0)),
                   pl.BlockSpec((1, 2, dout), lambda i: (i, 0, 0))),
        out_shape=(jax.ShapeDtypeStruct((batch, dout), jnp.bfloat16),
                   jax.ShapeDtypeStruct((nb, 2, dout), jnp.float32)),
        compiler_params=pltpu.CompilerParams(
            dimension_semantics=("parallel",), vmem_limit_bytes=vmem),
        cost_estimate=pl.CostEstimate(flops=flops, transcendentals=0,
                                      bytes_accessed=bytes_accessed),
    )(h, scale, shift, w)


def _bn_finalize(h, scale, shift, tb, out_dtype):
    batch, d = h.shape
    nb = batch // tb
    flops = 2 * batch * d
    out_bytes = np.dtype(out_dtype).itemsize
    bytes_accessed = h.size * 2 + (scale.size + shift.size) * 4 + batch * d * out_bytes
    vmem = _vmem_limit([((tb, d), jnp.bfloat16),
                        ((1, d), jnp.float32), ((1, d), jnp.float32),
                        ((tb, d), out_dtype)])
    return pl.pallas_call(
        bn_finalize_kernel,
        grid=(nb,),
        in_specs=[pl.BlockSpec((tb, d), lambda i: (i, 0)),
                  pl.BlockSpec((1, d), lambda i: (0, 0)),
                  pl.BlockSpec((1, d), lambda i: (0, 0))],
        out_specs=pl.BlockSpec((tb, d), lambda i: (i, 0)),
        out_shape=jax.ShapeDtypeStruct((batch, d), out_dtype),
        compiler_params=pltpu.CompilerParams(
            dimension_semantics=("parallel",), vmem_limit_bytes=vmem),
        cost_estimate=pl.CostEstimate(flops=flops, transcendentals=0,
                                      bytes_accessed=bytes_accessed),
    )(h, scale, shift)


def _fused_forward(x, w1, g1, be1, w2, g2, be2, w3, g3, be3, out_dtype):
    batch, in_dim = x.shape
    hidden = w1.shape[1]
    out_dim = w3.shape[1]
    kernel = functools.partial(fused_mlp_kernel, 1.0 / batch)
    flops = 2 * batch * (in_dim * hidden + hidden * hidden + hidden * out_dim)
    bytes_accessed = (x.size * 4 + (w1.size + w2.size + w3.size) * 2
                      + (g1.size + be1.size + g2.size + be2.size + g3.size + be3.size) * 4
                      + batch * out_dim * np.dtype(out_dtype).itemsize)
    maxd = max(in_dim, hidden, out_dim)
    vmem = _vmem_limit(
        [(x.shape, x.dtype),
         (w1.shape, jnp.bfloat16), (w2.shape, jnp.bfloat16), (w3.shape, jnp.bfloat16),
         ((batch, maxd), jnp.float32), ((batch, maxd), jnp.float32),
         ((batch, out_dim), out_dtype)],
        headroom=16 << 20)

    def full2d(shape):
        return pl.BlockSpec(shape, lambda i: (0, 0))

    return pl.pallas_call(
        kernel,
        grid=(1,),
        in_specs=[full2d(x.shape), full2d(w1.shape), full2d(g1.shape), full2d(be1.shape),
                  full2d(w2.shape), full2d(g2.shape), full2d(be2.shape),
                  full2d(w3.shape), full2d(g3.shape), full2d(be3.shape)],
        out_specs=full2d((batch, out_dim)),
        out_shape=jax.ShapeDtypeStruct((batch, out_dim), out_dtype),
        compiler_params=pltpu.CompilerParams(
            dimension_semantics=("arbitrary",), vmem_limit_bytes=vmem),
        cost_estimate=pl.CostEstimate(flops=flops, transcendentals=3 * maxd,
                                      bytes_accessed=bytes_accessed),
    )(x, w1, g1, be1, w2, g2, be2, w3, g3, be3)


def projection_mlp_forward(x, params, *, batch_tile=None, fused=None,
                           out_dtype=jnp.float32):
    """x: (B, in_dim) float32. params: flat tuple of 12 arrays (see init_params)."""
    (w1, _b1, g1, be1, w2, _b2, g2, be2, w3, _b3, g3, be3) = params
    # Linear biases are intentionally unused: they cancel under training-mode BN.
    batch, in_dim = x.shape
    hidden = w1.shape[1]
    out_dim = w3.shape[1]

    # bf16 weights for the MXU (tiny tensors; pre-cast once). x is cast in-kernel.
    w1b = w1.astype(jnp.bfloat16)
    w2b = w2.astype(jnp.bfloat16)
    w3b = w3.astype(jnp.bfloat16)

    vmem_cap = _tpu_vmem_capacity_bytes()
    if fused is None:
        fused = _fused_fits(batch, in_dim, hidden, out_dim, vmem_cap)

    if fused:
        return _fused_forward(x, w1b, g1, be1, w2b, g2, be2, w3b, g3, be3, out_dtype)

    max_tile = 2048 if vmem_cap >= (96 << 20) else 512
    tb = _pick_batch_tile(batch, batch_tile, max_tile)

    h1, st1 = _linear_stats(x, w1b, tb)
    sc1, sh1 = _fold_bn(st1, g1, be1, batch)
    h2, st2 = _bn_relu_linear_stats(h1, sc1, sh1, w2b, tb)
    sc2, sh2 = _fold_bn(st2, g2, be2, batch)
    h3, st3 = _bn_relu_linear_stats(h2, sc2, sh2, w3b, tb)
    sc3, sh3 = _fold_bn(st3, g3, be3, batch)
    return _bn_finalize(h3, sc3, sh3, tb, out_dtype)


# ----------------------------- params & reference -----------------------------


def init_params(key, in_dim, hidden_dim, out_dim):
    """Deterministic synthetic parameters.

    Linear weights are stored as (in, out) (transposed vs PyTorch's (out, in)).
    BN gamma/beta are stored as (1, dim) lane vectors.
    """
    ks = jax.random.split(key, 6)

    def lin(kw, kb, din, dout):
        w = jax.random.normal(kw, (din, dout), jnp.float32) * (1.0 / jnp.sqrt(din))
        b = jax.random.normal(kb, (1, dout), jnp.float32) * 0.02
        return w, b

    w1, b1 = lin(ks[0], ks[1], in_dim, hidden_dim)
    w2, b2 = lin(ks[2], ks[3], hidden_dim, hidden_dim)
    w3, b3 = lin(ks[4], ks[5], hidden_dim, out_dim)

    def bn(dim, salt):
        g = 1.0 + 0.01 * jnp.arange(dim, dtype=jnp.float32).reshape(1, dim) / dim + salt
        be = 0.02 * jnp.arange(dim, dtype=jnp.float32).reshape(1, dim) / dim - salt
        return g, be

    g1, be1 = bn(hidden_dim, 0.00)
    g2, be2 = bn(hidden_dim, 0.01)
    g3, be3 = bn(out_dim, 0.02)

    return (w1, b1, g1, be1, w2, b2, g2, be2, w3, b3, g3, be3)


def reference_forward(x, params):
    """Pure-JAX reference with full PyTorch semantics (biases included, two-pass BN).

    Uses the same bf16 matmul operands (f32 accumulation) as the kernel so the
    comparison tolerance only has to absorb bf16 intermediate-storage rounding and
    the fused-variance / dropped-bias reassociation.
    """
    (w1, b1, g1, be1, w2, b2, g2, be2, w3, b3, g3, be3) = params

    def mm(a, w):
        return jnp.dot(a.astype(jnp.bfloat16), w.astype(jnp.bfloat16),
                       preferred_element_type=jnp.float32)

    def bn(h, g, be):
        m = jnp.mean(h, axis=0, keepdims=True)
        v = jnp.mean((h - m) ** 2, axis=0, keepdims=True)
        return (h - m) / jnp.sqrt(v + BN_EPS) * g + be

    h = jnp.maximum(bn(mm(x, w1) + b1, g1, be1), 0.0)
    h = jnp.maximum(bn(mm(h, w2) + b2, g2, be2), 0.0)
    return bn(mm(h, w3) + b3, g3, be3)


# ----------------------------- test -------------------------------------------


if __name__ == "__main__":
    # Small but TPU-friendly shapes: batch multiple of 16, features multiples of 128,
    # hidden == out (module requirement). Don't tune tiles on these toy sizes.
    B, IN_DIM, HIDDEN_DIM, OUT_DIM = 64, 128, 256, 256

    key = jax.random.PRNGKey(0)
    kx, kp = jax.random.split(key)
    x = jax.random.normal(kx, (B, IN_DIM), jnp.float32)
    params = init_params(kp, IN_DIM, HIDDEN_DIM, OUT_DIM)

    ref = reference_forward(x, params)

    # Path 1: batch-tiled 4-call chain (bf16 intermediates, hoisted BN fold).
    fwd_tiled = jax.jit(functools.partial(projection_mlp_forward,
                                          batch_tile=16, fused=False))
    out_tiled = jax.block_until_ready(fwd_tiled(x, params))

    # Path 2: fully VMEM-resident fused fast path (auto-selected for small batches).
    fwd_fused = jax.jit(projection_mlp_forward)
    out_fused = jax.block_until_ready(fwd_fused(x, params))

    for out in (out_tiled, out_fused):
        assert out.shape == (B, OUT_DIM)
        assert out.dtype == jnp.float32

    # bf16 matmul operands + bf16 intermediate storage + dropped (mathematically
    # redundant) biases + fused variance => small rounding-level differences vs the
    # f32-intermediate reference; outputs are O(1) post-BN.
    err_t = float(jnp.max(jnp.abs(out_tiled - ref)))
    err_f = float(jnp.max(jnp.abs(out_fused - ref)))
    assert jnp.allclose(out_tiled, ref, atol=3e-2, rtol=2e-2), f"tiled max abs err = {err_t}"
    assert jnp.allclose(out_fused, ref, atol=3e-2, rtol=2e-2), f"fused max abs err = {err_f}"

    print("KERNEL_OK")
</pallas_src>

<mosaic_0001>
module attributes {stable_mosaic.version = 11 : i64} {
  func.func @linear_stats_kernel(%arg0: i32, %arg1: memref<16x128xf32, #tpu.memory_space<vmem>>, %arg2: memref<128x256xbf16, #tpu.memory_space<vmem>>, %arg3: memref<16x256xbf16, #tpu.memory_space<vmem>>, %arg4: memref<1x2x256xf32, #tpu.memory_space<vmem>>) attributes {dimension_semantics = [#tpu.dimension_semantics<parallel>], iteration_bounds = array<i64: 4>, scalar_prefetch = 0 : i64, scratch_operands = 0 : i64, tpu.core_type = #tpu.core_type<tc>, window_params = [{transform_indices = @transform_0, window_bounds = array<i64: 16, 128>}, {pipeline_mode = #tpu.pipeline_mode<synchronous>, transform_indices = @transform_1, window_bounds = array<i64: 128, 256>}, {transform_indices = @transform_2, window_bounds = array<i64: 16, 256>}, {transform_indices = @transform_3, window_bounds = array<i64: 1, 2, 256>}]} {
    %c0 = arith.constant 0 : index
    %c0_0 = arith.constant 0 : index
    %0 = vector.load %arg1[%c0, %c0_0] : memref<16x128xf32, #tpu.memory_space<vmem>>, vector<16x128xf32>
    %1 = arith.truncf %0 : vector<16x128xf32> to vector<16x128xbf16>
    %c0_1 = arith.constant 0 : index
    %c0_2 = arith.constant 0 : index
    %2 = vector.load %arg2[%c0_1, %c0_2] : memref<128x256xbf16, #tpu.memory_space<vmem>>, vector<128x256xbf16>
    %cst = arith.constant dense<0.000000e+00> : vector<16x256xf32>
    %3 = tpu.matmul %1, %2, %cst {dimension_numbers = #tpu.dot_dimension_numbers<[1], [0], [0], [1], [0, 0, 1, 1], [], []>} : vector<16x128xbf16>, vector<128x256xbf16>, vector<16x256xf32> -> vector<16x256xf32>
    %4 = arith.truncf %3 : vector<16x256xf32> to vector<16x256xbf16>
    %c0_3 = arith.constant 0 : index
    %c0_4 = arith.constant 0 : index
    %5 = vector.load %arg3[%c0_3, %c0_4] : memref<16x256xbf16, #tpu.memory_space<vmem>>, vector<16x256xbf16>
    tpu.vector_store %arg3[%c0_3, %c0_4], %4 {strides = array<i32>} : memref<16x256xbf16, #tpu.memory_space<vmem>>, vector<16x256xbf16>,
    %cst_5 = arith.constant dense<0.000000e+00> : vector<256xf32>
    %6 = vector.multi_reduction <add>, %3, %cst_5 [0] : vector<16x256xf32> to vector<256xf32>
    %7 = vector.shape_cast %6 : vector<256xf32> to vector<1x256xf32>
    %8 = arith.mulf %3, %3 : vector<16x256xf32>
    %cst_6 = arith.constant dense<0.000000e+00> : vector<256xf32>
    %9 = vector.multi_reduction <add>, %8, %cst_6 [0] : vector<16x256xf32> to vector<256xf32>
    %10 = vector.shape_cast %9 : vector<256xf32> to vector<1x256xf32>
    %11 = tpu.concatenate %7, %10 in 0 : vector<1x256xf32>, vector<1x256xf32> -> vector<2x256xf32>
    %12 = vector.shape_cast %11 : vector<2x256xf32> to vector<1x2x256xf32>
    %c0_7 = arith.constant 0 : index
    %c0_8 = arith.constant 0 : index
    %c0_9 = arith.constant 0 : index
    %13 = vector.load %arg4[%c0_7, %c0_8, %c0_9] : memref<1x2x256xf32, #tpu.memory_space<vmem>>, vector<1x2x256xf32>
    tpu.vector_store %arg4[%c0_7, %c0_8, %c0_9], %12 {strides = array<i32>} : memref<1x2x256xf32, #tpu.memory_space<vmem>>, vector<1x2x256xf32>,
    return
  }
  func.func @transform_0(%arg0: i32) -> (i32, i32) {
    %c0_i32 = arith.constant 0 : i32
    %c0_i32_0 = arith.constant 0 : i32
    return %arg0, %c0_i32 : i32, i32
  }
  func.func @transform_1(%arg0: i32) -> (i32, i32) {
    %c0_i32 = arith.constant 0 : i32
    %c0_i32_0 = arith.constant 0 : i32
    %c0_i32_1 = arith.constant 0 : i32
    return %c0_i32, %c0_i32_0 : i32, i32
  }
  func.func @transform_2(%arg0: i32) -> (i32, i32) {
    %c0_i32 = arith.constant 0 : i32
    %c0_i32_0 = arith.constant 0 : i32
    return %arg0, %c0_i32 : i32, i32
  }
  func.func @transform_3(%arg0: i32) -> (i32, i32, i32) {
    %c0_i32 = arith.constant 0 : i32
    %c0_i32_0 = arith.constant 0 : i32
    %c0_i32_1 = arith.constant 0 : i32
    return %arg0, %c0_i32, %c0_i32_0 : i32, i32, i32
  }
}

module attributes {stable_mosaic.version = 11 : i64} {
  func.func @bn_finalize_kernel(%arg0: i32, %arg1: memref<16x256xbf16, #tpu.memory_space<vmem>>, %arg2: memref<1x256xf32, #tpu.memory_space<vmem>>, %arg3: memref<1x256xf32, #tpu.memory_space<vmem>>, %arg4: memref<16x256xf32, #tpu.memory_space<vmem>>) attributes {dimension_semantics = [#tpu.dimension_semantics<parallel>], iteration_bounds = array<i64: 4>, scalar_prefetch = 0 : i64, scratch_operands = 0 : i64, tpu.core_type = #tpu.core_type<tc>, window_params = [{transform_indices = @transform_0, window_bounds = array<i64: 16, 256>}, {pipeline_mode = #tpu.pipeline_mode<synchronous>, transform_indices = @transform_1, window_bounds = array<i64: 1, 256>}, {pipeline_mode = #tpu.pipeline_mode<synchronous>, transform_indices = @transform_2, window_bounds = array<i64: 1, 256>}, {transform_indices = @transform_3, window_bounds = array<i64: 16, 256>}]} {
    %c0 = arith.constant 0 : index
    %c0_0 = arith.constant 0 : index
    %0 = vector.load %arg1[%c0, %c0_0] : memref<16x256xbf16, #tpu.memory_space<vmem>>, vector<16x256xbf16>
    %1 = arith.extf %0 : vector<16x256xbf16> to vector<16x256xf32>
    %c0_1 = arith.constant 0 : index
    %c0_2 = arith.constant 0 : index
    %2 = vector.load %arg2[%c0_1, %c0_2] : memref<1x256xf32, #tpu.memory_space<vmem>>, vector<1x256xf32>
    %3 = vector.broadcast %2 : vector<1x256xf32> to vector<16x256xf32>
    %4 = arith.mulf %1, %3 : vector<16x256xf32>
    %c0_3 = arith.constant 0 : index
    %c0_4 = arith.constant 0 : index
    %5 = vector.load %arg3[%c0_3, %c0_4] : memref<1x256xf32, #tpu.memory_space<vmem>>, vector<1x256xf32>
    %6 = vector.broadcast %5 : vector<1x256xf32> to vector<16x256xf32>
    %7 = arith.addf %4, %6 : vector<16x256xf32>
    %c0_5 = arith.constant 0 : index
    %c0_6 = arith.constant 0 : index
    %8 = vector.load %arg4[%c0_5, %c0_6] : memref<16x256xf32, #tpu.memory_space<vmem>>, vector<16x256xf32>
    tpu.vector_store %arg4[%c0_5, %c0_6], %7 {strides = array<i32>} : memref<16x256xf32, #tpu.memory_space<vmem>>, vector<16x256xf32>,
    return
  }
  func.func @transform_0(%arg0: i32) -> (i32, i32) {
    %c0_i32 = arith.constant 0 : i32
    %c0_i32_0 = arith.constant 0 : i32
    return %arg0, %c0_i32 : i32, i32
  }
  func.func @transform_1(%arg0: i32) -> (i32, i32) {
    %c0_i32 = arith.constant 0 : i32
    %c0_i32_0 = arith.constant 0 : i32
    %c0_i32_1 = arith.constant 0 : i32
    return %c0_i32, %c0_i32_0 : i32, i32
  }
  func.func @transform_2(%arg0: i32) -> (i32, i32) {
    %c0_i32 = arith.constant 0 : i32
    %c0_i32_0 = arith.constant 0 : i32
    %c0_i32_1 = arith.constant 0 : i32
    return %c0_i32, %c0_i32_0 : i32, i32
  }
  func.func @transform_3(%arg0: i32) -> (i32, i32) {
    %c0_i32 = arith.constant 0 : i32
    %c0_i32_0 = arith.constant 0 : i32
    return %arg0, %c0_i32 : i32, i32
  }
}

module attributes {stable_mosaic.version = 11 : i64} {
  func.func @bn_relu_linear_stats_kernel(%arg0: i32, %arg1: memref<16x256xbf16, #tpu.memory_space<vmem>>, %arg2: memref<1x256xf32, #tpu.memory_space<vmem>>, %arg3: memref<1x256xf32, #tpu.memory_space<vmem>>, %arg4: memref<256x256xbf16, #tpu.memory_space<vmem>>, %arg5: memref<16x256xbf16, #tpu.memory_space<vmem>>, %arg6: memref<1x2x256xf32, #tpu.memory_space<vmem>>) attributes {dimension_semantics = [#tpu.dimension_semantics<parallel>], iteration_bounds = array<i64: 4>, scalar_prefetch = 0 : i64, scratch_operands = 0 : i64, tpu.core_type = #tpu.core_type<tc>, window_params = [{transform_indices = @transform_0, window_bounds = array<i64: 16, 256>}, {pipeline_mode = #tpu.pipeline_mode<synchronous>, transform_indices = @transform_1, window_bounds = array<i64: 1, 256>}, {pipeline_mode = #tpu.pipeline_mode<synchronous>, transform_indices = @transform_2, window_bounds = array<i64: 1, 256>}, {pipeline_mode = #tpu.pipeline_mode<synchronous>, transform_indices = @transform_3, window_bounds = array<i64: 256, 256>}, {transform_indices = @transform_4, window_bounds = array<i64: 16, 256>}, {transform_indices = @transform_5, window_bounds = array<i64: 1, 2, 256>}]} {
    %c0 = arith.constant 0 : index
    %c0_0 = arith.constant 0 : index
    %0 = vector.load %arg1[%c0, %c0_0] : memref<16x256xbf16, #tpu.memory_space<vmem>>, vector<16x256xbf16>
    %1 = arith.extf %0 : vector<16x256xbf16> to vector<16x256xf32>
    %c0_1 = arith.constant 0 : index
    %c0_2 = arith.constant 0 : index
    %2 = vector.load %arg2[%c0_1, %c0_2] : memref<1x256xf32, #tpu.memory_space<vmem>>, vector<1x256xf32>
    %3 = vector.broadcast %2 : vector<1x256xf32> to vector<16x256xf32>
    %4 = arith.mulf %1, %3 : vector<16x256xf32>
    %c0_3 = arith.constant 0 : index
    %c0_4 = arith.constant 0 : index
    %5 = vector.load %arg3[%c0_3, %c0_4] : memref<1x256xf32, #tpu.memory_space<vmem>>, vector<1x256xf32>
    %6 = vector.broadcast %5 : vector<1x256xf32> to vector<16x256xf32>
    %7 = arith.addf %4, %6 : vector<16x256xf32>
    %cst = arith.constant 0.000000e+00 : f32
    %8 = vector.broadcast %cst : f32 to vector<16x256xf32>
    %9 = arith.maximumf %7, %8 : vector<16x256xf32>
    %10 = arith.truncf %9 : vector<16x256xf32> to vector<16x256xbf16>
    %c0_5 = arith.constant 0 : index
    %c0_6 = arith.constant 0 : index
    %11 = vector.load %arg4[%c0_5, %c0_6] : memref<256x256xbf16, #tpu.memory_space<vmem>>, vector<256x256xbf16>
    %cst_7 = arith.constant dense<0.000000e+00> : vector<16x256xf32>
    %12 = tpu.matmul %10, %11, %cst_7 {dimension_numbers = #tpu.dot_dimension_numbers<[1], [0], [0], [1], [0, 0, 1, 1], [], []>} : vector<16x256xbf16>, vector<256x256xbf16>, vector<16x256xf32> -> vector<16x256xf32>
    %13 = arith.truncf %12 : vector<16x256xf32> to vector<16x256xbf16>
    %c0_8 = arith.constant 0 : index
    %c0_9 = arith.constant 0 : index
    %14 = vector.load %arg5[%c0_8, %c0_9] : memref<16x256xbf16, #tpu.memory_space<vmem>>, vector<16x256xbf16>
    tpu.vector_store %arg5[%c0_8, %c0_9], %13 {strides = array<i32>} : memref<16x256xbf16, #tpu.memory_space<vmem>>, vector<16x256xbf16>,
    %cst_10 = arith.constant dense<0.000000e+00> : vector<256xf32>
    %15 = vector.multi_reduction <add>, %12, %cst_10 [0] : vector<16x256xf32> to vector<256xf32>
    %16 = vector.shape_cast %15 : vector<256xf32> to vector<1x256xf32>
    %17 = arith.mulf %12, %12 : vector<16x256xf32>
    %cst_11 = arith.constant dense<0.000000e+00> : vector<256xf32>
    %18 = vector.multi_reduction <add>, %17, %cst_11 [0] : vector<16x256xf32> to vector<256xf32>
    %19 = vector.shape_cast %18 : vector<256xf32> to vector<1x256xf32>
    %20 = tpu.concatenate %16, %19 in 0 : vector<1x256xf32>, vector<1x256xf32> -> vector<2x256xf32>
    %21 = vector.shape_cast %20 : vector<2x256xf32> to vector<1x2x256xf32>
    %c0_12 = arith.constant 0 : index
    %c0_13 = arith.constant 0 : index
    %c0_14 = arith.constant 0 : index
    %22 = vector.load %arg6[%c0_12, %c0_13, %c0_14] : memref<1x2x256xf32, #tpu.memory_space<vmem>>, vector<1x2x256xf32>
    tpu.vector_store %arg6[%c0_12, %c0_13, %c0_14], %21 {strides = array<i32>} : memref<1x2x256xf32, #tpu.memory_space<vmem>>, vector<1x2x256xf32>,
    return
  }
  func.func @transform_0(%arg0: i32) -> (i32, i32) {
    %c0_i32 = arith.constant 0 : i32
    %c0_i32_0 = arith.constant 0 : i32
    return %arg0, %c0_i32 : i32, i32
  }
  func.func @transform_1(%arg0: i32) -> (i32, i32) {
    %c0_i32 = arith.constant 0 : i32
    %c0_i32_0 = arith.constant 0 : i32
    %c0_i32_1 = arith.constant 0 : i32
    return %c0_i32, %c0_i32_0 : i32, i32
  }
  func.func @transform_2(%arg0: i32) -> (i32, i32) {
    %c0_i32 = arith.constant 0 : i32
    %c0_i32_0 = arith.constant 0 : i32
    %c0_i32_1 = arith.constant 0 : i32
    return %c0_i32, %c0_i32_0 : i32, i32
  }
  func.func @transform_3(%arg0: i32) -> (i32, i32) {
    %c0_i32 = arith.constant 0 : i32
    %c0_i32_0 = arith.constant 0 : i32
    %c0_i32_1 = arith.constant 0 : i32
    return %c0_i32, %c0_i32_0 : i32, i32
  }
  func.func @transform_4(%arg0: i32) -> (i32, i32) {
    %c0_i32 = arith.constant 0 : i32
    %c0_i32_0 = arith.constant 0 : i32
    return %arg0, %c0_i32 : i32, i32
  }
  func.func @transform_5(%arg0: i32) -> (i32, i32, i32) {
    %c0_i32 = arith.constant 0 : i32
    %c0_i32_0 = arith.constant 0 : i32
    %c0_i32_1 = arith.constant 0 : i32
    return %arg0, %c0_i32, %c0_i32_0 : i32, i32, i32
  }
}

</mosaic_0001>

<llo_original>
// kernel: projection_mlp_forward.4
$region0: #{projection_mlp_forward.4}
  #allocation0 [shape = 'u32[]', space=smem, size = 0x4, offset = 0x4, fixed_abs, tag = 'smem constant byte address 0x4 - core index']
  #allocation1 [shape = 'u32[72,128]{1,0:T(1,128)}', space=vmem, size = 0x9000, scoped, tag = 'internal scratch']
  %s0 = inlined_call_operand.hbm [shape: f32[64,128], index: 0, kind: input, shape index: {}]
  %s1 = inlined_call_operand.vmem [shape: bf16[128,256], index: 1, kind: input, shape index: {}]
  %s2 = inlined_call_operand.vmem [shape: bf16[64,256], index: 2, kind: output, shape index: {0}]
  %s3 = inlined_call_operand.vmem [shape: f32[4,2,256], index: 3, kind: output, shape index: {1}]
  %4 = xla_tuple %s2, %s3
  %s5 = sld [smem:[#allocation0]]
  $region53: #{projection_mlp_forward.4} parent=0
    _
  %s7 = ssub.s32 1, %s5
  %s8 = scalar_select 0, %s7, %s5
  $region1: #{projection_mlp_forward.4} parent=0
    #allocation2 [shape = 'u8[16384]{0}', space=vmem, size = 0x4000, scoped, tag = 'input window, operand 0']
    #allocation3 [shape = 's32[2]{0}', space=sflag, size = 0x8, scoped, tag = 'scoped memory for projection_mlp_forward.4']
    %9 = vsyncpa [#allocation3], 0
    %s10 = scalar_lea.sflag [#allocation3], 1
    %11 = vsyncpa %s10, 0
    loop: start=0, step=1, limit=6
    $region2: #{projection_mlp_forward.4} parent=1 // loop_pre_header
      _
    $region3: #{projection_mlp_forward.4} parent=1 // loop_header
      %s13 = sphi 0, %s17
      %p14 = scmp.ge.s32.totalorder %s13, 6
      %s23 = sphi 0, %s25
      %s26 = sphi 0, %s23
      %s27 = sphi 0, %s26
      %s43 = sphi 0, %s27
      %s47 = sphi 0, %s47
      %s49 = sphi 0, %s47
      %s50 = sphi 0, %s49
      %s64 = sphi 0, %s50
      %s70 = sphi 0, %s72
      %s73 = sphi 0, %s70
      %s74 = sphi 0, %s73
      %s90 = sphi 0, %s74
      %s96 = sphi 0, %s98
      %s99 = sphi 0, %s96
      %s100 = sphi 0, %s99
      %s116 = sphi 0, %s100
    $region4: #{projection_mlp_forward.4} parent=1 // loop_header_branch
      %16 = sbr.rel (%p14) target = $region8
    $region5: #{projection_mlp_forward.4} parent=1 // loop_body
      %s18 = ssub.s32 %s13, 1
      %s19 = ssub.s32 %s13, 2
      %s20 = sadd.s32 %s13, 1
      %s21 = ssub.s32 %s13, %s20
      %p22 = scmp.eq.s32.totalorder %s21, 0
      %s24 = sadd.s32 %s23, 1
      %s25 = scalar_select %p22, %s23, %s24
      %p28 = pneg %p22
      %p29 = scmp.eq.s32.totalorder %s13, 3
      %p30 = por %p28, %p29
      %p31 = scmp.ne.s32.totalorder %s23, %s26
      %p32 = scmp.eq.s32.totalorder %s13, 0
      %p33 = por %p31, %p32
      %p34 = scmp.ne.s32.totalorder %s23, %s26
      %p35 = scmp.eq.s32.totalorder %s18, 3
      %p36 = por %p34, %p35
      %p37 = scmp.ne.s32.totalorder %s26, %s27
      %p38 = scmp.eq.s32.totalorder %s18, 0
      %p39 = por %p37, %p38
      %p40 = scmp.ne.s32.totalorder %s26, %s27
      %p41 = scmp.eq.s32.totalorder %s19, 3
      %p42 = por %p40, %p41
      %p44 = scmp.ne.s32.totalorder %s27, %s43
      %p45 = scmp.eq.s32.totalorder %s19, 0
      %p46 = por %p44, %p45
      %s48 = sadd.s32 %s47, 1
      %p51 = scmp.eq.s32.totalorder %s13, 3
      %p52 = scmp.ne.s32.totalorder %s47, %s49
      %p53 = scmp.eq.s32.totalorder %s13, 0
      %p54 = por %p52, %p53
      %p55 = scmp.ne.s32.totalorder %s47, %s49
      %p56 = scmp.eq.s32.totalorder %s18, 3
      %p57 = por %p55, %p56
      %p58 = scmp.ne.s32.totalorder %s49, %s50
      %p59 = scmp.eq.s32.totalorder %s18, 0
      %p60 = por %p58, %p59
      %p61 = scmp.ne.s32.totalorder %s49, %s50
      %p62 = scmp.eq.s32.totalorder %s19, 3
      %p63 = por %p61, %p62
      %p65 = scmp.ne.s32.totalorder %s50, %s64
      %p66 = scmp.eq.s32.totalorder %s19, 0
      %p67 = por %p65, %p66
      %s68 = ssub.s32 %s13, %s20
      %p69 = scmp.eq.s32.totalorder %s68, 0
      %s71 = sadd.s32 %s70, 1
      %s72 = scalar_select %p69, %s70, %s71
      %p75 = pneg %p69
      %p76 = scmp.eq.s32.totalorder %s13, 3
      %p77 = por %p75, %p76
      %p78 = scmp.ne.s32.totalorder %s70, %s73
      %p79 = scmp.eq.s32.totalorder %s13, 0
      %p80 = por %p78, %p79
      %p81 = scmp.ne.s32.totalorder %s70, %s73
      %p82 = scmp.eq.s32.totalorder %s18, 3
      %p83 = por %p81, %p82
      %p84 = scmp.ne.s32.totalorder %s73, %s74
      %p85 = scmp.eq.s32.totalorder %s18, 0
      %p86 = por %p84, %p85
      %p87 = scmp.ne.s32.totalorder %s73, %s74
      %p88 = scmp.eq.s32.totalorder %s19, 3
      %p89 = por %p87, %p88
      %p91 = scmp.ne.s32.totalorder %s74, %s90
      %p92 = scmp.eq.s32.totalorder %s19, 0
      %p93 = por %p91, %p92
      %s94 = ssub.s32 %s13, %s20
      %p95 = scmp.eq.s32.totalorder %s94, 0
      %s97 = sadd.s32 %s96, 1
      %s98 = scalar_select %p95, %s96, %s97
      %p101 = pneg %p95
      %p102 = scmp.eq.s32.totalorder %s13, 3
      %p103 = por %p101, %p102
      %p104 = scmp.ne.s32.totalorder %s96, %s99
      %p105 = scmp.eq.s32.totalorder %s13, 0
      %p106 = por %p104, %p105
      %p107 = scmp.ne.s32.totalorder %s96, %s99
      %p108 = scmp.eq.s32.totalorder %s18, 3
      %p109 = por %p107, %p108
      %p110 = scmp.ne.s32.totalorder %s99, %s100
      %p111 = scmp.eq.s32.totalorder %s18, 0
      %p112 = por %p110, %p111
      %p113 = scmp.ne.s32.totalorder %s99, %s100
      %p114 = scmp.eq.s32.totalorder %s19, 3
      %p115 = por %p113, %p114
      %p117 = scmp.ne.s32.totalorder %s100, %s116
      %p118 = scmp.eq.s32.totalorder %s19, 0
      %p119 = por %p117, %p118
      %p120 = scmp.le.s32.totalorder 1, %s13
      %p121 = scmp.lt.s32.totalorder %s13, 5
      %p122 = pnand %p120, %p121
      %p123 = pneg %p122
      // Predicated region
      $region9: #{projection_mlp_forward.4} parent=5 // pred_check
        _
      $region10: #{projection_mlp_forward.4} parent=5 // pred_check_branch
        %125 = sbr.rel (%p122) target = $region12
      $region11: #{projection_mlp_forward.4} parent=5 // pred_region
        %s126 = ssub.s32 %s13, 1
        // Predicated region
        $region13: #{projection_mlp_forward.4} parent=11 // pred_check
          %p127 = pneg %p60
        $region14: #{projection_mlp_forward.4} parent=11 // pred_check_branch
          %129 = sbr.rel (%p127) target = $region16
        $region15: #{projection_mlp_forward.4} parent=11 // pred_region
          _
        $region16: #{projection_mlp_forward.4} parent=11 // pred_fallthru
          _
      $region12: #{projection_mlp_forward.4} parent=5 // pred_fallthru
        _
      %p130 = scmp.lt.s32.totalorder %s13, 4
      // Predicated region
      $region17: #{projection_mlp_forward.4} parent=5 // pred_check
        %p131 = pneg %p130
      $region18: #{projection_mlp_forward.4} parent=5 // pred_check_branch
        %133 = sbr.rel (%p131) target = $region20
      $region19: #{projection_mlp_forward.4} parent=5 // pred_region
        // Predicated region
        $region21: #{projection_mlp_forward.4} parent=19 // pred_check
          %p134 = pneg %p33
        $region22: #{projection_mlp_forward.4} parent=19 // pred_check_branch
          %136 = sbr.rel (%p134) target = $region24
        $region23: #{projection_mlp_forward.4} parent=19 // pred_region
          %s137 = sand.u32 %s23, 1
          %s138 = scalar_lea.sflag [#allocation3], %s137
          %s139 = sand.u32 %s23, 1
          %s140 = smul.addr %s139, 16
          %s141 = scalar_lea.vmem [#allocation2], %s140
          %s142 = smul.u32 2, %s13
          %144 = vsyncadd %s138, 0
          %s145 = smul.addr %s142, 8
          %s146 = scalar_lea.hbm %s0, %s145
          %s147 = sshll.u32 %s146, 4
          %s148 = int_to_ptr.hbm [resolvable:$true] %s147
          %s149 = sshll.u32 %s141, 4
          %s150 = int_to_ptr.vmem [resolvable:$true] %s149
          %155 = dma.hbm_to_vmem [thread:$0]  %s148, 256, %s150, %s138, 128, 128, 8
        $region24: #{projection_mlp_forward.4} parent=19 // pred_fallthru
          _
      $region20: #{projection_mlp_forward.4} parent=5 // pred_fallthru
        _
      %p156 = scmp.le.s32.totalorder 1, %s13
      %p157 = scmp.lt.s32.totalorder %s13, 5
      %p158 = pnand %p156, %p157
      %p159 = pneg %p158
      // Predicated region
      $region25: #{projection_mlp_forward.4} parent=5 // pred_check
        _
      $region26: #{projection_mlp_forward.4} parent=5 // pred_check_branch
        %161 = sbr.rel (%p158) target = $region28
      $region27: #{projection_mlp_forward.4} parent=5 // pred_region
        %s162 = ssub.s32 %s13, 1
        %s163 = sand.u32 %s26, 1
        %s164 = scalar_lea.sflag [#allocation3], %s163
        %s165 = sand.u32 %s26, 1
        %s166 = smul.addr %s165, 16
        %s167 = scalar_lea.vmem [#allocation2], %s166
        // Predicated region
        $region29: #{projection_mlp_forward.4} parent=27 // pred_check
          %p168 = pneg %p39
        $region30: #{projection_mlp_forward.4} parent=27 // pred_check_branch
          %170 = sbr.rel (%p168) target = $region32
        $region31: #{projection_mlp_forward.4} parent=27 // pred_region
          %172 = dma.done %s164, 256
        $region32: #{projection_mlp_forward.4} parent=27 // pred_fallthru
          _
        %s173 = sand.u32 %s26, 1
        %s174 = scalar_lea.sflag [#allocation3], %s173
        %s175 = sand.u32 %s26, 1
        %s176 = smul.addr %s175, 16
        %s177 = scalar_lea.vmem [#allocation2], %s176
        %p178 = pneg %p39
        %p179 = pneg %p36
        %p180 = pneg %p60
        %p181 = pneg %p57
        %p182 = pneg %p86
        %p183 = pneg %p83
        %s184 = smul.u32 2, %s18
        %p185 = scmp.lt.s32.totalorder %s184, 7
        %s186 = scalar_select %p185, %s184, 7
        %s187 = smul.addr %s186, 2
        %s188 = smul.addr %s187, 4
        %s189 = scalar_lea.vmem %s2, %s188
        %p190 = pneg %p112
        %p191 = pneg %p109
        %p192 = scmp.lt.s32.totalorder %s18, 3
        %s193 = scalar_select %p192, %s18, 3
        %s194 = smul.addr %s193, 2
        %s195 = smul.addr %s194, 2
        %s196 = scalar_lea.vmem %s3, %s195
        %s197 = smul.u32 2, %s18
        %s198 = smul.u32 2, %s18
        %p199 = scmp.lt.s32.totalorder %s198, 7
        %s200 = scalar_select %p199, %s198, 7
        %s201 = smul.addr %s200, 2
        %s202 = smul.addr %s201, 4
        %s203 = scalar_lea.vmem %s2, %s202
        %s204 = smul.u32 2, %s18
        %p205 = scmp.lt.s32.totalorder %s18, 3
        %s206 = scalar_select %p205, %s18, 3
        %s207 = smul.addr %s206, 2
        %s208 = smul.addr %s207, 2
        %s209 = scalar_lea.vmem %s3, %s208
        %v210 = vld [vmem:[%s167] sm:$0xff]
        %v211 = vld [vmem:[%s167 + $0x8] sm:$0xff]
        %v212 = vpack.c.bf16 %v211, %v210
        %v213 = vld [vmem:[%s1] sm:$0xff]
        %v214 = vld [vmem:[%s1 + $0x8] sm:$0xff]
        %v215 = vld [vmem:[%s1 + $0x10] sm:$0xff]
        %v216 = vld [vmem:[%s1 + $0x18] sm:$0xff]
        %v217 = vld [vmem:[%s1 + $0x20] sm:$0xff]
        %v218 = vld [vmem:[%s1 + $0x28] sm:$0xff]
        %v219 = vld [vmem:[%s1 + $0x30] sm:$0xff]
        %v220 = vld [vmem:[%s1 + $0x38] sm:$0xff]
        %v221 = vld [vmem:[%s1 + $0x40] sm:$0xff]
        %v222 = vld [vmem:[%s1 + $0x48] sm:$0xff]
        %v223 = vld [vmem:[%s1 + $0x50] sm:$0xff]
        %v224 = vld [vmem:[%s1 + $0x58] sm:$0xff]
        %v225 = vld [vmem:[%s1 + $0x60] sm:$0xff]
        %v226 = vld [vmem:[%s1 + $0x68] sm:$0xff]
        %v227 = vld [vmem:[%s1 + $0x70] sm:$0xff]
        %v228 = vld [vmem:[%s1 + $0x78] sm:$0xff]
        %v245 = vunpack.c.l.b16 %v213
        %v246 = vunpack.c.h.b16 %v213
        %v247 = vunpack.c.l.b16 %v214
        %v248 = vunpack.c.h.b16 %v214
        %v249 = vunpack.c.l.b16 %v215
        %v250 = vunpack.c.h.b16 %v215
        %v251 = vunpack.c.l.b16 %v216
        %v252 = vunpack.c.h.b16 %v216
        %v253 = vunpack.c.l.b16 %v217
        %v254 = vunpack.c.h.b16 %v217
        %v255 = vunpack.c.l.b16 %v218
        %v256 = vunpack.c.h.b16 %v218
        %v257 = vunpack.c.l.b16 %v219
        %v258 = vunpack.c.h.b16 %v219
        %v259 = vunpack.c.l.b16 %v220
        %v260 = vunpack.c.h.b16 %v220
        %v261 = vunpack.c.l.b16 %v221
        %v262 = vunpack.c.h.b16 %v221
        %v263 = vunpack.c.l.b16 %v222
        %v264 = vunpack.c.h.b16 %v222
        %v265 = vunpack.c.l.b16 %v223
        %v266 = vunpack.c.h.b16 %v223
        %v267 = vunpack.c.l.b16 %v224
        %v268 = vunpack.c.h.b16 %v224
        %v269 = vunpack.c.l.b16 %v225
        %v270 = vunpack.c.h.b16 %v225
        %v271 = vunpack.c.l.b16 %v226
        %v272 = vunpack.c.h.b16 %v226
        %v273 = vunpack.c.l.b16 %v227
        %v274 = vunpack.c.h.b16 %v227
        %v275 = vunpack.c.l.b16 %v228
        %v276 = vunpack.c.h.b16 %v228
        %v277 = vpack.c.b16 %v247, %v245
        %v278 = vpack.c.b16 %v248, %v246
        %v279 = vpack.c.b16 %v251, %v249
        %v280 = vpack.c.b16 %v252, %v250
        %v281 = vpack.c.b16 %v255, %v253
        %v282 = vpack.c.b16 %v256, %v254
        %v283 = vpack.c.b16 %v259, %v257
        %v284 = vpack.c.b16 %v260, %v258
        %v285 = vpack.c.b16 %v263, %v261
        %v286 = vpack.c.b16 %v264, %v262
        %v287 = vpack.c.b16 %v267, %v265
        %v288 = vpack.c.b16 %v268, %v266
        %v289 = vpack.c.b16 %v271, %v269
        %v290 = vpack.c.b16 %v272, %v270
        %v291 = vpack.c.b16 %v275, %v273
        %v292 = vpack.c.b16 %v276, %v274
        %309 = vmatpush.bf16.msra.mxu0 %v291
        %310 = vmatpush.bf16.msra.mxu0 %v289
        %311 = vmatpush.bf16.msra.mxu0 %v287
        %312 = vmatpush.bf16.msra.mxu0 %v285
        %313 = vmatpush.bf16.msra.mxu0 %v283
        %314 = vmatpush.bf16.msra.mxu0 %v281
        %315 = vmatpush.bf16.msra.mxu0 %v279
        %316 = vmatpush.bf16.msra.mxu0 %v277
        %317 = vmatmul.bf16.gmra.mxu0 %v212
        %v318 = vpop.f32.mrf.mxu0
        %v319 = vadd.f32 0.0, %v318
        %v320 = vpop.f32.mrf.mxu0
        %v321 = vadd.f32 0.0, %v320
        %322 = vdwg.mxu0
        %323 = vmatpush.bf16.msra.mxu0 %v292
        %324 = vmatpush.bf16.msra.mxu0 %v290
        %325 = vmatpush.bf16.msra.mxu0 %v288
        %326 = vmatpush.bf16.msra.mxu0 %v286
        %327 = vmatpush.bf16.msra.mxu0 %v284
        %328 = vmatpush.bf16.msra.mxu0 %v282
        %329 = vmatpush.bf16.msra.mxu0 %v280
        %330 = vmatpush.bf16.msra.mxu0 %v278
        %331 = vmatmul.bf16.gmra.mxu0 %v212
        %v332 = vpop.f32.mrf.mxu0
        %v333 = vadd.f32 0.0, %v332
        %v334 = vpop.f32.mrf.mxu0
        %v335 = vadd.f32 0.0, %v334
        %336 = vdwg.mxu0
        %v337 = vpack.c.bf16 %v333, %v319
        %v338 = vpack.c.bf16 %v335, %v321
        %339 = vst [vmem:[%s203] sm:$0xff] %v337
        %340 = vst [vmem:[%s203 + $0x8] sm:$0xff] %v338
        %v341 = vadd.f32 %v319, %v321
        %v342 = vrot.slane %v341, 4
        %v343 = vadd.f32 %v341, %v342
        %v344 = vrot.slane %v343, 2
        %v345 = vadd.f32 %v343, %v344
        %v346 = vrot.slane %v345, 1
        %v347 = vadd.f32 %v345, %v346
        %v348 = vadd.f32 %v333, %v335
        %v349 = vrot.slane %v348, 4
        %v350 = vadd.f32 %v348, %v349
        %v351 = vrot.slane %v350, 2
        %v352 = vadd.f32 %v350, %v351
        %v353 = vrot.slane %v352, 1
        %v354 = vadd.f32 %v352, %v353
        %v355 = vmul.f32 %v319, %v319
        %v356 = vmul.f32 %v333, %v333
        %v357 = vmul.f32 %v321, %v321
        %v358 = vmul.f32 %v335, %v335
        %v359 = vadd.f32 %v355, %v357
        %v360 = vrot.slane %v359, 4
        %v361 = vadd.f32 %v359, %v360
        %v362 = vrot.slane %v361, 2
        %v363 = vadd.f32 %v361, %v362
        %v364 = vrot.slane %v363, 1
        %v365 = vadd.f32 %v363, %v364
        %v366 = vadd.f32 %v356, %v358
        %v367 = vrot.slane %v366, 4
        %v368 = vadd.f32 %v366, %v367
        %v369 = vrot.slane %v368, 2
        %v370 = vadd.f32 %v368, %v369
        %v371 = vrot.slane %v370, 1
        %v372 = vadd.f32 %v370, %v371
        %vm373 = vcmask 1040384
        %v374 = vsel %vm373, %v347, %v365
        %v375 = vsel %vm373, %v354, %v372
        %v378 = vrot.slane %v375, 6
        %vm379 = vcmask 1041408
        %v380 = vsel %vm379, %v374, %v378
        %382 = vst [vmem:[%s209] sm:$0xf] %v380
        %s383 = smul.u32 2, %s18
        %p384 = scmp.lt.s32.totalorder %s383, 7
        %s385 = scalar_select %p384, %s383, 7
        %s386 = smul.addr %s385, 2
        %s387 = smul.addr %s386, 4
        %s388 = scalar_lea.vmem %s2, %s387
        %p389 = scmp.lt.s32.totalorder %s18, 3
        %s390 = scalar_select %p389, %s18, 3
        %s391 = smul.addr %s390, 2
        %s392 = smul.addr %s391, 2
        %s393 = scalar_lea.vmem %s3, %s392
        // Predicated region
        $region33: #{projection_mlp_forward.4} parent=27 // pred_check
          %p394 = pneg %p83
        $region34: #{projection_mlp_forward.4} parent=27 // pred_check_branch
          %396 = sbr.rel (%p394) target = $region36
        $region35: #{projection_mlp_forward.4} parent=27 // pred_region
          %s397 = smul.u32 2, %s18
        $region36: #{projection_mlp_forward.4} parent=27 // pred_fallthru
          _
        // Predicated region
        $region37: #{projection_mlp_forward.4} parent=27 // pred_check
          %p398 = pneg %p109
        $region38: #{projection_mlp_forward.4} parent=27 // pred_check_branch
          %400 = sbr.rel (%p398) target = $region40
        $region39: #{projection_mlp_forward.4} parent=27 // pred_region
          _
        $region40: #{projection_mlp_forward.4} parent=27 // pred_fallthru
          _
      $region28: #{projection_mlp_forward.4} parent=5 // pred_fallthru
        _
      %p401 = scmp.le.s32.totalorder 2, %s13
      // Predicated region
      $region41: #{projection_mlp_forward.4} parent=5 // pred_check
        %p402 = pneg %p401
      $region42: #{projection_mlp_forward.4} parent=5 // pred_check_branch
        %404 = sbr.rel (%p402) target = $region44
      $region43: #{projection_mlp_forward.4} parent=5 // pred_region
        %s405 = ssub.s32 %s13, 2
        // Predicated region
        $region45: #{projection_mlp_forward.4} parent=43 // pred_check
          %p406 = pneg %p89
        $region46: #{projection_mlp_forward.4} parent=43 // pred_check_branch
          %408 = sbr.rel (%p406) target = $region48
        $region47: #{projection_mlp_forward.4} parent=43 // pred_region
          %s409 = smul.u32 2, %s19
          %p410 = scmp.lt.s32.totalorder %s409, 7
          %s411 = scalar_select %p410, %s409, 7
          %s412 = smul.addr %s411, 2
          %s413 = smul.addr %s412, 4
          %s414 = scalar_lea.vmem %s2, %s413
        $region48: #{projection_mlp_forward.4} parent=43 // pred_fallthru
          _
        // Predicated region
        $region49: #{projection_mlp_forward.4} parent=43 // pred_check
          %p415 = pneg %p115
        $region50: #{projection_mlp_forward.4} parent=43 // pred_check_branch
          %417 = sbr.rel (%p415) target = $region52
        $region51: #{projection_mlp_forward.4} parent=43 // pred_region
          %p418 = scmp.lt.s32.totalorder %s19, 3
          %s419 = scalar_select %p418, %s19, 3
          %s420 = smul.addr %s419, 2
          %s421 = smul.addr %s420, 2
          %s422 = scalar_lea.vmem %s3, %s421
        $region52: #{projection_mlp_forward.4} parent=43 // pred_fallthru
          _
      $region44: #{projection_mlp_forward.4} parent=5 // pred_fallthru
        _
    $region6: #{projection_mlp_forward.4} parent=1 // loop_footer
      %s17 = sadd.s32 1, %s13
    $region7: #{projection_mlp_forward.4} parent=1 // loop_footer_branch
      %12 = sbr.rel target = $region3
    $region8: #{projection_mlp_forward.4} parent=1 // loop_exit
      _
    %423 = vsyncpa [#allocation3], 1
    %s424 = scalar_lea.sflag [#allocation3], 1
    %425 = vsyncpa %s424, 1

// kernel: projection_mlp_forward.7
$region0: #{projection_mlp_forward.7}
  #allocation0 [shape = 'u32[]', space=smem, size = 0x4, offset = 0x4, fixed_abs, tag = 'smem constant byte address 0x4 - core index']
  #allocation1 [shape = 'u32[72,128]{1,0:T(1,128)}', space=vmem, size = 0x9000, scoped, tag = 'internal scratch']
  %s0 = inlined_call_operand.vmem [shape: bf16[64,256], index: 0, kind: input, shape index: {}]
  %s1 = inlined_call_operand.vmem [shape: f32[1,256], index: 1, kind: input, shape index: {}]
  %s2 = inlined_call_operand.vmem [shape: f32[1,256], index: 2, kind: input, shape index: {}]
  %s3 = inlined_call_operand.hbm [shape: f32[64,256], index: 3, kind: output, shape index: {}]
  %s4 = sld [smem:[#allocation0]]
  $region45: #{projection_mlp_forward.7} parent=0
    _
  %s6 = ssub.s32 1, %s4
  %s7 = scalar_select 0, %s6, %s4
  $region1: #{projection_mlp_forward.7} parent=0
    #allocation2 [shape = 'u8[32768]{0}', space=vmem, size = 0x8000, scoped, tag = 'output window, operand 0']
    #allocation3 [shape = 's32[2]{0}', space=sflag, size = 0x8, scoped, tag = 'scoped memory for projection_mlp_forward.7']
    %8 = vsyncpa [#allocation3], 0
    %s9 = scalar_lea.sflag [#allocation3], 1
    %10 = vsyncpa %s9, 0
    loop: start=0, step=1, limit=6
    $region2: #{projection_mlp_forward.7} parent=1 // loop_pre_header
      _
    $region3: #{projection_mlp_forward.7} parent=1 // loop_header
      %s12 = sphi 0, %s16
      %p13 = scmp.ge.s32.totalorder %s12, 6
      %s22 = sphi 0, %s24
      %s25 = sphi 0, %s22
      %s26 = sphi 0, %s25
      %s42 = sphi 0, %s26
      %s46 = sphi 0, %s46
      %s48 = sphi 0, %s46
      %s49 = sphi 0, %s48
      %s63 = sphi 0, %s49
      %s67 = sphi 0, %s67
      %s69 = sphi 0, %s67
      %s70 = sphi 0, %s69
      %s84 = sphi 0, %s70
      %s90 = sphi 0, %s92
      %s93 = sphi 0, %s90
      %s94 = sphi 0, %s93
      %s110 = sphi 0, %s94
    $region4: #{projection_mlp_forward.7} parent=1 // loop_header_branch
      %15 = sbr.rel (%p13) target = $region8
    $region5: #{projection_mlp_forward.7} parent=1 // loop_body
      %s17 = ssub.s32 %s12, 1
      %s18 = ssub.s32 %s12, 2
      %s19 = sadd.s32 %s12, 1
      %s20 = ssub.s32 %s12, %s19
      %p21 = scmp.eq.s32.totalorder %s20, 0
      %s23 = sadd.s32 %s22, 1
      %s24 = scalar_select %p21, %s22, %s23
      %p27 = pneg %p21
      %p28 = scmp.eq.s32.totalorder %s12, 3
      %p29 = por %p27, %p28
      %p30 = scmp.ne.s32.totalorder %s22, %s25
      %p31 = scmp.eq.s32.totalorder %s12, 0
      %p32 = por %p30, %p31
      %p33 = scmp.ne.s32.totalorder %s22, %s25
      %p34 = scmp.eq.s32.totalorder %s17, 3
      %p35 = por %p33, %p34
      %p36 = scmp.ne.s32.totalorder %s25, %s26
      %p37 = scmp.eq.s32.totalorder %s17, 0
      %p38 = por %p36, %p37
      %p39 = scmp.ne.s32.totalorder %s25, %s26
      %p40 = scmp.eq.s32.totalorder %s18, 3
      %p41 = por %p39, %p40
      %p43 = scmp.ne.s32.totalorder %s26, %s42
      %p44 = scmp.eq.s32.totalorder %s18, 0
      %p45 = por %p43, %p44
      %s47 = sadd.s32 %s46, 1
      %p50 = scmp.eq.s32.totalorder %s12, 3
      %p51 = scmp.ne.s32.totalorder %s46, %s48
      %p52 = scmp.eq.s32.totalorder %s12, 0
      %p53 = por %p51, %p52
      %p54 = scmp.ne.s32.totalorder %s46, %s48
      %p55 = scmp.eq.s32.totalorder %s17, 3
      %p56 = por %p54, %p55
      %p57 = scmp.ne.s32.totalorder %s48, %s49
      %p58 = scmp.eq.s32.totalorder %s17, 0
      %p59 = por %p57, %p58
      %p60 = scmp.ne.s32.totalorder %s48, %s49
      %p61 = scmp.eq.s32.totalorder %s18, 3
      %p62 = por %p60, %p61
      %p64 = scmp.ne.s32.totalorder %s49, %s63
      %p65 = scmp.eq.s32.totalorder %s18, 0
      %p66 = por %p64, %p65
      %s68 = sadd.s32 %s67, 1
      %p71 = scmp.eq.s32.totalorder %s12, 3
      %p72 = scmp.ne.s32.totalorder %s67, %s69
      %p73 = scmp.eq.s32.totalorder %s12, 0
      %p74 = por %p72, %p73
      %p75 = scmp.ne.s32.totalorder %s67, %s69
      %p76 = scmp.eq.s32.totalorder %s17, 3
      %p77 = por %p75, %p76
      %p78 = scmp.ne.s32.totalorder %s69, %s70
      %p79 = scmp.eq.s32.totalorder %s17, 0
      %p80 = por %p78, %p79
      %p81 = scmp.ne.s32.totalorder %s69, %s70
      %p82 = scmp.eq.s32.totalorder %s18, 3
      %p83 = por %p81, %p82
      %p85 = scmp.ne.s32.totalorder %s70, %s84
      %p86 = scmp.eq.s32.totalorder %s18, 0
      %p87 = por %p85, %p86
      %s88 = ssub.s32 %s12, %s19
      %p89 = scmp.eq.s32.totalorder %s88, 0
      %s91 = sadd.s32 %s90, 1
      %s92 = scalar_select %p89, %s90, %s91
      %p95 = pneg %p89
      %p96 = scmp.eq.s32.totalorder %s12, 3
      %p97 = por %p95, %p96
      %p98 = scmp.ne.s32.totalorder %s90, %s93
      %p99 = scmp.eq.s32.totalorder %s12, 0
      %p100 = por %p98, %p99
      %p101 = scmp.ne.s32.totalorder %s90, %s93
      %p102 = scmp.eq.s32.totalorder %s17, 3
      %p103 = por %p101, %p102
      %p104 = scmp.ne.s32.totalorder %s93, %s94
      %p105 = scmp.eq.s32.totalorder %s17, 0
      %p106 = por %p104, %p105
      %p107 = scmp.ne.s32.totalorder %s93, %s94
      %p108 = scmp.eq.s32.totalorder %s18, 3
      %p109 = por %p107, %p108
      %p111 = scmp.ne.s32.totalorder %s94, %s110
      %p112 = scmp.eq.s32.totalorder %s18, 0
      %p113 = por %p111, %p112
      %p114 = scmp.le.s32.totalorder 1, %s12
      %p115 = scmp.lt.s32.totalorder %s12, 5
      %p116 = pnand %p114, %p115
      %p117 = pneg %p116
      // Predicated region
      $region9: #{projection_mlp_forward.7} parent=5 // pred_check
        _
      $region10: #{projection_mlp_forward.7} parent=5 // pred_check_branch
        %119 = sbr.rel (%p116) target = $region12
      $region11: #{projection_mlp_forward.7} parent=5 // pred_region
        %s120 = ssub.s32 %s12, 1
        // Predicated region
        $region13: #{projection_mlp_forward.7} parent=11 // pred_check
          %p121 = pneg %p59
        $region14: #{projection_mlp_forward.7} parent=11 // pred_check_branch
          %123 = sbr.rel (%p121) target = $region16
        $region15: #{projection_mlp_forward.7} parent=11 // pred_region
          _
        $region16: #{projection_mlp_forward.7} parent=11 // pred_fallthru
          _
        // Predicated region
        $region17: #{projection_mlp_forward.7} parent=11 // pred_check
          %p124 = pneg %p80
        $region18: #{projection_mlp_forward.7} parent=11 // pred_check_branch
          %126 = sbr.rel (%p124) target = $region20
        $region19: #{projection_mlp_forward.7} parent=11 // pred_region
          _
        $region20: #{projection_mlp_forward.7} parent=11 // pred_fallthru
          _
      $region12: #{projection_mlp_forward.7} parent=5 // pred_fallthru
        _
      %p127 = scmp.lt.s32.totalorder %s12, 4
      // Predicated region
      $region21: #{projection_mlp_forward.7} parent=5 // pred_check
        %p128 = pneg %p127
      $region22: #{projection_mlp_forward.7} parent=5 // pred_check_branch
        %130 = sbr.rel (%p128) target = $region24
      $region23: #{projection_mlp_forward.7} parent=5 // pred_region
        // Predicated region
        $region25: #{projection_mlp_forward.7} parent=23 // pred_check
          %p131 = pneg %p32
        $region26: #{projection_mlp_forward.7} parent=23 // pred_check_branch
          %133 = sbr.rel (%p131) target = $region28
        $region27: #{projection_mlp_forward.7} parent=23 // pred_region
          %s134 = smul.u32 2, %s12
          %p135 = scmp.lt.s32.totalorder %s134, 7
          %s136 = scalar_select %p135, %s134, 7
          %s137 = smul.addr %s136, 2
          %s138 = smul.addr %s137, 4
          %s139 = scalar_lea.vmem %s0, %s138
          %s140 = smul.u32 2, %s12
        $region28: #{projection_mlp_forward.7} parent=23 // pred_fallthru
          _
      $region24: #{projection_mlp_forward.7} parent=5 // pred_fallthru
        _
      %p141 = scmp.le.s32.totalorder 1, %s12
      %p142 = scmp.lt.s32.totalorder %s12, 5
      %p143 = pnand %p141, %p142
      %p144 = pneg %p143
      // Predicated region
      $region29: #{projection_mlp_forward.7} parent=5 // pred_check
        _
      $region30: #{projection_mlp_forward.7} parent=5 // pred_check_branch
        %146 = sbr.rel (%p143) target = $region32
      $region31: #{projection_mlp_forward.7} parent=5 // pred_region
        %s147 = ssub.s32 %s12, 1
        %s148 = smul.u32 2, %s17
        %p149 = scmp.lt.s32.totalorder %s148, 7
        %s150 = scalar_select %p149, %s148, 7
        %s151 = smul.addr %s150, 2
        %s152 = smul.addr %s151, 4
        %s153 = scalar_lea.vmem %s0, %s152
        %p154 = pneg %p38
        %p155 = pneg %p35
        %p156 = pneg %p59
        %p157 = pneg %p56
        %p158 = pneg %p80
        %p159 = pneg %p77
        %p160 = pneg %p106
        %p161 = pneg %p103
        %s162 = sand.u32 %s93, 1
        %s163 = scalar_lea.sflag [#allocation3], %s162
        %s164 = sand.u32 %s93, 1
        %s165 = smul.addr %s164, 32
        %s166 = scalar_lea.vmem [#allocation2], %s165
        %s167 = smul.u32 2, %s17
        %p168 = scmp.lt.s32.totalorder %s167, 7
        %s169 = scalar_select %p168, %s167, 7
        %s170 = smul.addr %s169, 2
        %s171 = smul.addr %s170, 4
        %s172 = scalar_lea.vmem %s0, %s171
        %s173 = smul.u32 2, %s17
        %s174 = smul.u32 2, %s17
        %v175 = vld [vmem:[%s172] sm:$0xff]
        %v176 = vld [vmem:[%s172 + $0x8] sm:$0xff]
        %v177 = vunpack.c.l.bf16 %v175
        %v178 = vunpack.c.h.bf16 %v175
        %v179 = vunpack.c.l.bf16 %v176
        %v180 = vunpack.c.h.bf16 %v176
        %v181 = vld [vmem:[%s1] sm:$0x3]
        %v183 = vperm.slane %v181, 0
        %v184 = vperm.slane %v181, 1
        %v187 = vmul.f32 %v177, %v183
        %v188 = vmul.f32 %v178, %v184
        %v189 = vmul.f32 %v179, %v183
        %v190 = vmul.f32 %v180, %v184
        %v191 = vld [vmem:[%s2] sm:$0x3]
        %v193 = vperm.slane %v191, 0
        %v194 = vperm.slane %v191, 1
        %v197 = vadd.f32 %v187, %v193
        %v198 = vadd.f32 %v188, %v194
        %v199 = vadd.f32 %v189, %v193
        %v200 = vadd.f32 %v190, %v194
        %201 = vst [vmem:[%s166] sm:$0xff] %v197
        %202 = vst [vmem:[%s166 + $0x8] sm:$0xff] %v198
        %203 = vst [vmem:[%s166 + $0x10] sm:$0xff] %v199
        %204 = vst [vmem:[%s166 + $0x18] sm:$0xff] %v200
        %s205 = sand.u32 %s93, 1
        %s206 = scalar_lea.sflag [#allocation3], %s205
        %s207 = sand.u32 %s93, 1
        %s208 = smul.addr %s207, 32
        %s209 = scalar_lea.vmem [#allocation2], %s208
        // Predicated region
        $region33: #{projection_mlp_forward.7} parent=31 // pred_check
          %p210 = pneg %p103
        $region34: #{projection_mlp_forward.7} parent=31 // pred_check_branch
          %212 = sbr.rel (%p210) target = $region36
        $region35: #{projection_mlp_forward.7} parent=31 // pred_region
          %s213 = smul.u32 2, %s17
          %215 = vsyncadd %s206, 0
          %s216 = smul.addr %s213, 2
          %s217 = smul.addr %s216, 8
          %s218 = scalar_lea.hbm %s3, %s217
          %s219 = sshll.u32 %s209, 4
          %s220 = int_to_ptr.vmem [resolvable:$true] %s219
          %s221 = sshll.u32 %s218, 4
          %s222 = int_to_ptr.hbm [resolvable:$true] %s221
          %227 = dma.vmem_to_hbm [thread:$0]  %s220, 512, %s222, %s206, 256, 256, 16
        $region36: #{projection_mlp_forward.7} parent=31 // pred_fallthru
          _
      $region32: #{projection_mlp_forward.7} parent=5 // pred_fallthru
        _
      %p228 = scmp.le.s32.totalorder 2, %s12
      // Predicated region
      $region37: #{projection_mlp_forward.7} parent=5 // pred_check
        %p229 = pneg %p228
      $region38: #{projection_mlp_forward.7} parent=5 // pred_check_branch
        %231 = sbr.rel (%p229) target = $region40
      $region39: #{projection_mlp_forward.7} parent=5 // pred_region
        %s232 = ssub.s32 %s12, 2
        // Predicated region
        $region41: #{projection_mlp_forward.7} parent=39 // pred_check
          %p233 = pneg %p109
        $region42: #{projection_mlp_forward.7} parent=39 // pred_check_branch
          %235 = sbr.rel (%p233) target = $region44
        $region43: #{projection_mlp_forward.7} parent=39 // pred_region
          %s236 = sand.u32 %s94, 1
          %s237 = scalar_lea.sflag [#allocation3], %s236
          %s238 = sand.u32 %s94, 1
          %s239 = smul.addr %s238, 32
          %s240 = scalar_lea.vmem [#allocation2], %s239
          %242 = dma.done %s237, 512
        $region44: #{projection_mlp_forward.7} parent=39 // pred_fallthru
          _
      $region40: #{projection_mlp_forward.7} parent=5 // pred_fallthru
        _
    $region6: #{projection_mlp_forward.7} parent=1 // loop_footer
      %s16 = sadd.s32 1, %s12
    $region7: #{projection_mlp_forward.7} parent=1 // loop_footer_branch
      %11 = sbr.rel target = $region3
    $region8: #{projection_mlp_forward.7} parent=1 // loop_exit
      _
    %243 = vsyncpa [#allocation3], 1
    %s244 = scalar_lea.sflag [#allocation3], 1
    %245 = vsyncpa %s244, 1

// kernel: projection_mlp_forward.5
$region0: #{projection_mlp_forward.5}
  #allocation0 [shape = 'u32[]', space=smem, size = 0x4, offset = 0x4, fixed_abs, tag = 'smem constant byte address 0x4 - core index']
  #allocation1 [shape = 'u32[72,128]{1,0:T(1,128)}', space=vmem, size = 0x9000, scoped, tag = 'internal scratch']
  %s0 = inlined_call_operand.vmem [shape: bf16[64,256], index: 0, kind: input, shape index: {}]
  %s1 = inlined_call_operand.vmem [shape: f32[1,256], index: 1, kind: input, shape index: {}]
  %s2 = inlined_call_operand.vmem [shape: f32[1,256], index: 2, kind: input, shape index: {}]
  %s3 = inlined_call_operand.vmem [shape: bf16[256,256], index: 3, kind: input, shape index: {}]
  %s4 = inlined_call_operand.vmem [shape: bf16[64,256], index: 4, kind: output, shape index: {0}]
  %s5 = inlined_call_operand.vmem [shape: f32[4,2,256], index: 5, kind: output, shape index: {1}]
  %6 = xla_tuple %s4, %s5
  %s7 = sld [smem:[#allocation0]]
  $region57: #{projection_mlp_forward.5} parent=0
    _
  %s9 = ssub.s32 1, %s7
  %s10 = scalar_select 0, %s9, %s7
  loop: start=0, step=1, limit=6
  $region2: #{projection_mlp_forward.5} parent=0 // loop_pre_header
    _
  $region3: #{projection_mlp_forward.5} parent=0 // loop_header
    %s12 = sphi 0, %s16
    %p13 = scmp.ge.s32.totalorder %s12, 6
    %s22 = sphi 0, %s24
    %s25 = sphi 0, %s22
    %s26 = sphi 0, %s25
    %s42 = sphi 0, %s26
    %s46 = sphi 0, %s46
    %s48 = sphi 0, %s46
    %s49 = sphi 0, %s48
    %s63 = sphi 0, %s49
    %s67 = sphi 0, %s67
    %s69 = sphi 0, %s67
    %s70 = sphi 0, %s69
    %s84 = sphi 0, %s70
    %s88 = sphi 0, %s88
    %s90 = sphi 0, %s88
    %s91 = sphi 0, %s90
    %s105 = sphi 0, %s91
    %s111 = sphi 0, %s113
    %s114 = sphi 0, %s111
    %s115 = sphi 0, %s114
    %s131 = sphi 0, %s115
    %s137 = sphi 0, %s139
    %s140 = sphi 0, %s137
    %s141 = sphi 0, %s140
    %s157 = sphi 0, %s141
  $region4: #{projection_mlp_forward.5} parent=0 // loop_header_branch
    %15 = sbr.rel (%p13) target = $region8
  $region5: #{projection_mlp_forward.5} parent=0 // loop_body
    %s17 = ssub.s32 %s12, 1
    %s18 = ssub.s32 %s12, 2
    %s19 = sadd.s32 %s12, 1
    %s20 = ssub.s32 %s12, %s19
    %p21 = scmp.eq.s32.totalorder %s20, 0
    %s23 = sadd.s32 %s22, 1
    %s24 = scalar_select %p21, %s22, %s23
    %p27 = pneg %p21
    %p28 = scmp.eq.s32.totalorder %s12, 3
    %p29 = por %p27, %p28
    %p30 = scmp.ne.s32.totalorder %s22, %s25
    %p31 = scmp.eq.s32.totalorder %s12, 0
    %p32 = por %p30, %p31
    %p33 = scmp.ne.s32.totalorder %s22, %s25
    %p34 = scmp.eq.s32.totalorder %s17, 3
    %p35 = por %p33, %p34
    %p36 = scmp.ne.s32.totalorder %s25, %s26
    %p37 = scmp.eq.s32.totalorder %s17, 0
    %p38 = por %p36, %p37
    %p39 = scmp.ne.s32.totalorder %s25, %s26
    %p40 = scmp.eq.s32.totalorder %s18, 3
    %p41 = por %p39, %p40
    %p43 = scmp.ne.s32.totalorder %s26, %s42
    %p44 = scmp.eq.s32.totalorder %s18, 0
    %p45 = por %p43, %p44
    %s47 = sadd.s32 %s46, 1
    %p50 = scmp.eq.s32.totalorder %s12, 3
    %p51 = scmp.ne.s32.totalorder %s46, %s48
    %p52 = scmp.eq.s32.totalorder %s12, 0
    %p53 = por %p51, %p52
    %p54 = scmp.ne.s32.totalorder %s46, %s48
    %p55 = scmp.eq.s32.totalorder %s17, 3
    %p56 = por %p54, %p55
    %p57 = scmp.ne.s32.totalorder %s48, %s49
    %p58 = scmp.eq.s32.totalorder %s17, 0
    %p59 = por %p57, %p58
    %p60 = scmp.ne.s32.totalorder %s48, %s49
    %p61 = scmp.eq.s32.totalorder %s18, 3
    %p62 = por %p60, %p61
    %p64 = scmp.ne.s32.totalorder %s49, %s63
    %p65 = scmp.eq.s32.totalorder %s18, 0
    %p66 = por %p64, %p65
    %s68 = sadd.s32 %s67, 1
    %p71 = scmp.eq.s32.totalorder %s12, 3
    %p72 = scmp.ne.s32.totalorder %s67, %s69
    %p73 = scmp.eq.s32.totalorder %s12, 0
    %p74 = por %p72, %p73
    %p75 = scmp.ne.s32.totalorder %s67, %s69
    %p76 = scmp.eq.s32.totalorder %s17, 3
    %p77 = por %p75, %p76
    %p78 = scmp.ne.s32.totalorder %s69, %s70
    %p79 = scmp.eq.s32.totalorder %s17, 0
    %p80 = por %p78, %p79
    %p81 = scmp.ne.s32.totalorder %s69, %s70
    %p82 = scmp.eq.s32.totalorder %s18, 3
    %p83 = por %p81, %p82
    %p85 = scmp.ne.s32.totalorder %s70, %s84
    %p86 = scmp.eq.s32.totalorder %s18, 0
    %p87 = por %p85, %p86
    %s89 = sadd.s32 %s88, 1
    %p92 = scmp.eq.s32.totalorder %s12, 3
    %p93 = scmp.ne.s32.totalorder %s88, %s90
    %p94 = scmp.eq.s32.totalorder %s12, 0
    %p95 = por %p93, %p94
    %p96 = scmp.ne.s32.totalorder %s88, %s90
    %p97 = scmp.eq.s32.totalorder %s17, 3
    %p98 = por %p96, %p97
    %p99 = scmp.ne.s32.totalorder %s90, %s91
    %p100 = scmp.eq.s32.totalorder %s17, 0
    %p101 = por %p99, %p100
    %p102 = scmp.ne.s32.totalorder %s90, %s91
    %p103 = scmp.eq.s32.totalorder %s18, 3
    %p104 = por %p102, %p103
    %p106 = scmp.ne.s32.totalorder %s91, %s105
    %p107 = scmp.eq.s32.totalorder %s18, 0
    %p108 = por %p106, %p107
    %s109 = ssub.s32 %s12, %s19
    %p110 = scmp.eq.s32.totalorder %s109, 0
    %s112 = sadd.s32 %s111, 1
    %s113 = scalar_select %p110, %s111, %s112
    %p116 = pneg %p110
    %p117 = scmp.eq.s32.totalorder %s12, 3
    %p118 = por %p116, %p117
    %p119 = scmp.ne.s32.totalorder %s111, %s114
    %p120 = scmp.eq.s32.totalorder %s12, 0
    %p121 = por %p119, %p120
    %p122 = scmp.ne.s32.totalorder %s111, %s114
    %p123 = scmp.eq.s32.totalorder %s17, 3
    %p124 = por %p122, %p123
    %p125 = scmp.ne.s32.totalorder %s114, %s115
    %p126 = scmp.eq.s32.totalorder %s17, 0
    %p127 = por %p125, %p126
    %p128 = scmp.ne.s32.totalorder %s114, %s115
    %p129 = scmp.eq.s32.totalorder %s18, 3
    %p130 = por %p128, %p129
    %p132 = scmp.ne.s32.totalorder %s115, %s131
    %p133 = scmp.eq.s32.totalorder %s18, 0
    %p134 = por %p132, %p133
    %s135 = ssub.s32 %s12, %s19
    %p136 = scmp.eq.s32.totalorder %s135, 0
    %s138 = sadd.s32 %s137, 1
    %s139 = scalar_select %p136, %s137, %s138
    %p142 = pneg %p136
    %p143 = scmp.eq.s32.totalorder %s12, 3
    %p144 = por %p142, %p143
    %p145 = scmp.ne.s32.totalorder %s137, %s140
    %p146 = scmp.eq.s32.totalorder %s12, 0
    %p147 = por %p145, %p146
    %p148 = scmp.ne.s32.totalorder %s137, %s140
    %p149 = scmp.eq.s32.totalorder %s17, 3
    %p150 = por %p148, %p149
    %p151 = scmp.ne.s32.totalorder %s140, %s141
    %p152 = scmp.eq.s32.totalorder %s17, 0
    %p153 = por %p151, %p152
    %p154 = scmp.ne.s32.totalorder %s140, %s141
    %p155 = scmp.eq.s32.totalorder %s18, 3
    %p156 = por %p154, %p155
    %p158 = scmp.ne.s32.totalorder %s141, %s157
    %p159 = scmp.eq.s32.totalorder %s18, 0
    %p160 = por %p158, %p159
    %p161 = scmp.le.s32.totalorder 1, %s12
    %p162 = scmp.lt.s32.totalorder %s12, 5
    %p163 = pnand %p161, %p162
    %p164 = pneg %p163
    // Predicated region
    $region9: #{projection_mlp_forward.5} parent=5 // pred_check
      _
    $region10: #{projection_mlp_forward.5} parent=5 // pred_check_branch
      %166 = sbr.rel (%p163) target = $region12
    $region11: #{projection_mlp_forward.5} parent=5 // pred_region
      %s167 = ssub.s32 %s12, 1
      // Predicated region
      $region13: #{projection_mlp_forward.5} parent=11 // pred_check
        %p168 = pneg %p59
      $region14: #{projection_mlp_forward.5} parent=11 // pred_check_branch
        %170 = sbr.rel (%p168) target = $region16
      $region15: #{projection_mlp_forward.5} parent=11 // pred_region
        _
      $region16: #{projection_mlp_forward.5} parent=11 // pred_fallthru
        _
      // Predicated region
      $region17: #{projection_mlp_forward.5} parent=11 // pred_check
        %p171 = pneg %p80
      $region18: #{projection_mlp_forward.5} parent=11 // pred_check_branch
        %173 = sbr.rel (%p171) target = $region20
      $region19: #{projection_mlp_forward.5} parent=11 // pred_region
        _
      $region20: #{projection_mlp_forward.5} parent=11 // pred_fallthru
        _
      // Predicated region
      $region21: #{projection_mlp_forward.5} parent=11 // pred_check
        %p174 = pneg %p101
      $region22: #{projection_mlp_forward.5} parent=11 // pred_check_branch
        %176 = sbr.rel (%p174) target = $region24
      $region23: #{projection_mlp_forward.5} parent=11 // pred_region
        _
      $region24: #{projection_mlp_forward.5} parent=11 // pred_fallthru
        _
    $region12: #{projection_mlp_forward.5} parent=5 // pred_fallthru
      _
    %p177 = scmp.lt.s32.totalorder %s12, 4
    // Predicated region
    $region25: #{projection_mlp_forward.5} parent=5 // pred_check
      %p178 = pneg %p177
    $region26: #{projection_mlp_forward.5} parent=5 // pred_check_branch
      %180 = sbr.rel (%p178) target = $region28
    $region27: #{projection_mlp_forward.5} parent=5 // pred_region
      // Predicated region
      $region29: #{projection_mlp_forward.5} parent=27 // pred_check
        %p181 = pneg %p32
      $region30: #{projection_mlp_forward.5} parent=27 // pred_check_branch
        %183 = sbr.rel (%p181) target = $region32
      $region31: #{projection_mlp_forward.5} parent=27 // pred_region
        %s184 = smul.u32 2, %s12
        %p185 = scmp.lt.s32.totalorder %s184, 7
        %s186 = scalar_select %p185, %s184, 7
        %s187 = smul.addr %s186, 2
        %s188 = smul.addr %s187, 4
        %s189 = scalar_lea.vmem %s0, %s188
        %s190 = smul.u32 2, %s12
      $region32: #{projection_mlp_forward.5} parent=27 // pred_fallthru
        _
    $region28: #{projection_mlp_forward.5} parent=5 // pred_fallthru
      _
    %p191 = scmp.le.s32.totalorder 1, %s12
    %p192 = scmp.lt.s32.totalorder %s12, 5
    %p193 = pnand %p191, %p192
    %p194 = pneg %p193
    // Predicated region
    $region33: #{projection_mlp_forward.5} parent=5 // pred_check
      _
    $region34: #{projection_mlp_forward.5} parent=5 // pred_check_branch
      %196 = sbr.rel (%p193) target = $region36
    $region35: #{projection_mlp_forward.5} parent=5 // pred_region
      %s197 = ssub.s32 %s12, 1
      %s198 = smul.u32 2, %s17
      %p199 = scmp.lt.s32.totalorder %s198, 7
      %s200 = scalar_select %p199, %s198, 7
      %s201 = smul.addr %s200, 2
      %s202 = smul.addr %s201, 4
      %s203 = scalar_lea.vmem %s0, %s202
      %p204 = pneg %p38
      %p205 = pneg %p35
      %p206 = pneg %p59
      %p207 = pneg %p56
      %p208 = pneg %p80
      %p209 = pneg %p77
      %p210 = pneg %p101
      %p211 = pneg %p98
      %p212 = pneg %p127
      %p213 = pneg %p124
      %s214 = smul.u32 2, %s17
      %p215 = scmp.lt.s32.totalorder %s214, 7
      %s216 = scalar_select %p215, %s214, 7
      %s217 = smul.addr %s216, 2
      %s218 = smul.addr %s217, 4
      %s219 = scalar_lea.vmem %s4, %s218
      %p220 = pneg %p153
      %p221 = pneg %p150
      %p222 = scmp.lt.s32.totalorder %s17, 3
      %s223 = scalar_select %p222, %s17, 3
      %s224 = smul.addr %s223, 2
      %s225 = smul.addr %s224, 2
      %s226 = scalar_lea.vmem %s5, %s225
      %s227 = smul.u32 2, %s17
      %p228 = scmp.lt.s32.totalorder %s227, 7
      %s229 = scalar_select %p228, %s227, 7
      %s230 = smul.addr %s229, 2
      %s231 = smul.addr %s230, 4
      %s232 = scalar_lea.vmem %s0, %s231
      %s233 = smul.u32 2, %s17
      %s234 = smul.u32 2, %s17
      %p235 = scmp.lt.s32.totalorder %s234, 7
      %s236 = scalar_select %p235, %s234, 7
      %s237 = smul.addr %s236, 2
      %s238 = smul.addr %s237, 4
      %s239 = scalar_lea.vmem %s4, %s238
      %s240 = smul.u32 2, %s17
      %p241 = scmp.lt.s32.totalorder %s17, 3
      %s242 = scalar_select %p241, %s17, 3
      %s243 = smul.addr %s242, 2
      %s244 = smul.addr %s243, 2
      %s245 = scalar_lea.vmem %s5, %s244
      %v246 = vld [vmem:[%s232] sm:$0xff]
      %v247 = vld [vmem:[%s232 + $0x8] sm:$0xff]
      %v248 = vunpack.c.l.bf16 %v246
      %v249 = vunpack.c.h.bf16 %v246
      %v250 = vunpack.c.l.bf16 %v247
      %v251 = vunpack.c.h.bf16 %v247
      %v252 = vld [vmem:[%s1] sm:$0x3]
      %v254 = vperm.slane %v252, 0
      %v255 = vperm.slane %v252, 1
      %v258 = vmul.f32 %v248, %v254
      %v259 = vmul.f32 %v249, %v255
      %v260 = vmul.f32 %v250, %v254
      %v261 = vmul.f32 %v251, %v255
      %v262 = vld [vmem:[%s2] sm:$0x3]
      %v264 = vperm.slane %v262, 0
      %v265 = vperm.slane %v262, 1
      %v268 = vadd.f32 %v258, %v264
      %v269 = vadd.f32 %v259, %v265
      %v270 = vadd.f32 %v260, %v264
      %v271 = vadd.f32 %v261, %v265
      %v272 = vmax.f32 %v268, 0.0
      %v273 = vmax.f32 %v269, 0.0
      %v274 = vmax.f32 %v270, 0.0
      %v275 = vmax.f32 %v271, 0.0
      %v276 = vpack.c.bf16 %v274, %v272
      %v277 = vpack.c.bf16 %v275, %v273
      %v278 = vld [vmem:[%s3] sm:$0xff]
      %v279 = vld [vmem:[%s3 + $0x8] sm:$0xff]
      %v280 = vld [vmem:[%s3 + $0x10] sm:$0xff]
      %v281 = vld [vmem:[%s3 + $0x18] sm:$0xff]
      %v282 = vld [vmem:[%s3 + $0x20] sm:$0xff]
      %v283 = vld [vmem:[%s3 + $0x28] sm:$0xff]
      %v284 = vld [vmem:[%s3 + $0x30] sm:$0xff]
      %v285 = vld [vmem:[%s3 + $0x38] sm:$0xff]
      %v286 = vld [vmem:[%s3 + $0x40] sm:$0xff]
      %v287 = vld [vmem:[%s3 + $0x48] sm:$0xff]
      %v288 = vld [vmem:[%s3 + $0x50] sm:$0xff]
      %v289 = vld [vmem:[%s3 + $0x58] sm:$0xff]
      %v290 = vld [vmem:[%s3 + $0x60] sm:$0xff]
      %v291 = vld [vmem:[%s3 + $0x68] sm:$0xff]
      %v292 = vld [vmem:[%s3 + $0x70] sm:$0xff]
      %v293 = vld [vmem:[%s3 + $0x78] sm:$0xff]
      %v294 = vld [vmem:[%s3 + $0x80] sm:$0xff]
      %v295 = vld [vmem:[%s3 + $0x88] sm:$0xff]
      %v296 = vld [vmem:[%s3 + $0x90] sm:$0xff]
      %v297 = vld [vmem:[%s3 + $0x98] sm:$0xff]
      %v298 = vld [vmem:[%s3 + $0xa0] sm:$0xff]
      %v299 = vld [vmem:[%s3 + $0xa8] sm:$0xff]
      %v300 = vld [vmem:[%s3 + $0xb0] sm:$0xff]
      %v301 = vld [vmem:[%s3 + $0xb8] sm:$0xff]
      %v302 = vld [vmem:[%s3 + $0xc0] sm:$0xff]
      %v303 = vld [vmem:[%s3 + $0xc8] sm:$0xff]
      %v304 = vld [vmem:[%s3 + $0xd0] sm:$0xff]
      %v305 = vld [vmem:[%s3 + $0xd8] sm:$0xff]
      %v306 = vld [vmem:[%s3 + $0xe0] sm:$0xff]
      %v307 = vld [vmem:[%s3 + $0xe8] sm:$0xff]
      %v308 = vld [vmem:[%s3 + $0xf0] sm:$0xff]
      %v309 = vld [vmem:[%s3 + $0xf8] sm:$0xff]
      %v342 = vunpack.c.l.b16 %v278
      %v343 = vunpack.c.h.b16 %v278
      %v344 = vunpack.c.l.b16 %v279
      %v345 = vunpack.c.h.b16 %v279
      %v346 = vunpack.c.l.b16 %v280
      %v347 = vunpack.c.h.b16 %v280
      %v348 = vunpack.c.l.b16 %v281
      %v349 = vunpack.c.h.b16 %v281
      %v350 = vunpack.c.l.b16 %v282
      %v351 = vunpack.c.h.b16 %v282
      %v352 = vunpack.c.l.b16 %v283
      %v353 = vunpack.c.h.b16 %v283
      %v354 = vunpack.c.l.b16 %v284
      %v355 = vunpack.c.h.b16 %v284
      %v356 = vunpack.c.l.b16 %v285
      %v357 = vunpack.c.h.b16 %v285
      %v358 = vunpack.c.l.b16 %v286
      %v359 = vunpack.c.h.b16 %v286
      %v360 = vunpack.c.l.b16 %v287
      %v361 = vunpack.c.h.b16 %v287
      %v362 = vunpack.c.l.b16 %v288
      %v363 = vunpack.c.h.b16 %v288
      %v364 = vunpack.c.l.b16 %v289
      %v365 = vunpack.c.h.b16 %v289
      %v366 = vunpack.c.l.b16 %v290
      %v367 = vunpack.c.h.b16 %v290
      %v368 = vunpack.c.l.b16 %v291
      %v369 = vunpack.c.h.b16 %v291
      %v370 = vunpack.c.l.b16 %v292
      %v371 = vunpack.c.h.b16 %v292
      %v372 = vunpack.c.l.b16 %v293
      %v373 = vunpack.c.h.b16 %v293
      %v374 = vunpack.c.l.b16 %v294
      %v375 = vunpack.c.h.b16 %v294
      %v376 = vunpack.c.l.b16 %v295
      %v377 = vunpack.c.h.b16 %v295
      %v378 = vunpack.c.l.b16 %v296
      %v379 = vunpack.c.h.b16 %v296
      %v380 = vunpack.c.l.b16 %v297
      %v381 = vunpack.c.h.b16 %v297
      %v382 = vunpack.c.l.b16 %v298
      %v383 = vunpack.c.h.b16 %v298
      %v384 = vunpack.c.l.b16 %v299
      %v385 = vunpack.c.h.b16 %v299
      %v386 = vunpack.c.l.b16 %v300
      %v387 = vunpack.c.h.b16 %v300
      %v388 = vunpack.c.l.b16 %v301
      %v389 = vunpack.c.h.b16 %v301
      %v390 = vunpack.c.l.b16 %v302
      %v391 = vunpack.c.h.b16 %v302
      %v392 = vunpack.c.l.b16 %v303
      %v393 = vunpack.c.h.b16 %v303
      %v394 = vunpack.c.l.b16 %v304
      %v395 = vunpack.c.h.b16 %v304
      %v396 = vunpack.c.l.b16 %v305
      %v397 = vunpack.c.h.b16 %v305
      %v398 = vunpack.c.l.b16 %v306
      %v399 = vunpack.c.h.b16 %v306
      %v400 = vunpack.c.l.b16 %v307
      %v401 = vunpack.c.h.b16 %v307
      %v402 = vunpack.c.l.b16 %v308
      %v403 = vunpack.c.h.b16 %v308
      %v404 = vunpack.c.l.b16 %v309
      %v405 = vunpack.c.h.b16 %v309
      %v406 = vpack.c.b16 %v344, %v342
      %v407 = vpack.c.b16 %v345, %v343
      %v408 = vpack.c.b16 %v348, %v346
      %v409 = vpack.c.b16 %v349, %v347
      %v410 = vpack.c.b16 %v352, %v350
      %v411 = vpack.c.b16 %v353, %v351
      %v412 = vpack.c.b16 %v356, %v354
      %v413 = vpack.c.b16 %v357, %v355
      %v414 = vpack.c.b16 %v360, %v358
      %v415 = vpack.c.b16 %v361, %v359
      %v416 = vpack.c.b16 %v364, %v362
      %v417 = vpack.c.b16 %v365, %v363
      %v418 = vpack.c.b16 %v368, %v366
      %v419 = vpack.c.b16 %v369, %v367
      %v420 = vpack.c.b16 %v372, %v370
      %v421 = vpack.c.b16 %v373, %v371
      %v422 = vpack.c.b16 %v376, %v374
      %v423 = vpack.c.b16 %v377, %v375
      %v424 = vpack.c.b16 %v380, %v378
      %v425 = vpack.c.b16 %v381, %v379
      %v426 = vpack.c.b16 %v384, %v382
      %v427 = vpack.c.b16 %v385, %v383
      %v428 = vpack.c.b16 %v388, %v386
      %v429 = vpack.c.b16 %v389, %v387
      %v430 = vpack.c.b16 %v392, %v390
      %v431 = vpack.c.b16 %v393, %v391
      %v432 = vpack.c.b16 %v396, %v394
      %v433 = vpack.c.b16 %v397, %v395
      %v434 = vpack.c.b16 %v400, %v398
      %v435 = vpack.c.b16 %v401, %v399
      %v436 = vpack.c.b16 %v404, %v402
      %v437 = vpack.c.b16 %v405, %v403
      %470 = vmatpush.bf16.msra.mxu0 %v420
      %471 = vmatpush.bf16.msra.mxu0 %v418
      %472 = vmatpush.bf16.msra.mxu0 %v416
      %473 = vmatpush.bf16.msra.mxu0 %v414
      %474 = vmatpush.bf16.msra.mxu0 %v412
      %475 = vmatpush.bf16.msra.mxu0 %v410
      %476 = vmatpush.bf16.msra.mxu0 %v408
      %477 = vmatpush.bf16.msra.mxu0 %v406
      %478 = vmatmul.bf16.gmra.mxu0 %v276
      %v479 = vpop.f32.mrf.mxu0
      %v480 = vadd.f32 0.0, %v479
      %v481 = vpop.f32.mrf.mxu0
      %v482 = vadd.f32 0.0, %v481
      %483 = vdwg.mxu0
      %484 = vmatpush.bf16.msra.mxu0 %v436
      %485 = vmatpush.bf16.msra.mxu0 %v434
      %486 = vmatpush.bf16.msra.mxu0 %v432
      %487 = vmatpush.bf16.msra.mxu0 %v430
      %488 = vmatpush.bf16.msra.mxu0 %v428
      %489 = vmatpush.bf16.msra.mxu0 %v426
      %490 = vmatpush.bf16.msra.mxu0 %v424
      %491 = vmatpush.bf16.msra.mxu0 %v422
      %492 = vmatmul.bf16.gmra.mxu0 %v277
      %v493 = vpop.f32.mrf.mxu0
      %v494 = vadd.f32 %v480, %v493
      %v495 = vpop.f32.mrf.mxu0
      %v496 = vadd.f32 %v482, %v495
      %497 = vdwg.mxu0
      %498 = vmatpush.bf16.msra.mxu0 %v421
      %499 = vmatpush.bf16.msra.mxu0 %v419
      %500 = vmatpush.bf16.msra.mxu0 %v417
      %501 = vmatpush.bf16.msra.mxu0 %v415
      %502 = vmatpush.bf16.msra.mxu0 %v413
      %503 = vmatpush.bf16.msra.mxu0 %v411
      %504 = vmatpush.bf16.msra.mxu0 %v409
      %505 = vmatpush.bf16.msra.mxu0 %v407
      %506 = vmatmul.bf16.gmra.mxu0 %v276
      %v507 = vpop.f32.mrf.mxu0
      %v508 = vadd.f32 0.0, %v507
      %v509 = vpop.f32.mrf.mxu0
      %v510 = vadd.f32 0.0, %v509
      %511 = vdwg.mxu0
      %512 = vmatpush.bf16.msra.mxu0 %v437
      %513 = vmatpush.bf16.msra.mxu0 %v435
      %514 = vmatpush.bf16.msra.mxu0 %v433
      %515 = vmatpush.bf16.msra.mxu0 %v431
      %516 = vmatpush.bf16.msra.mxu0 %v429
      %517 = vmatpush.bf16.msra.mxu0 %v427
      %518 = vmatpush.bf16.msra.mxu0 %v425
      %519 = vmatpush.bf16.msra.mxu0 %v423
      %520 = vmatmul.bf16.gmra.mxu0 %v277
      %v521 = vpop.f32.mrf.mxu0
      %v522 = vadd.f32 %v508, %v521
      %v523 = vpop.f32.mrf.mxu0
      %v524 = vadd.f32 %v510, %v523
      %525 = vdwg.mxu0
      %v526 = vpack.c.bf16 %v522, %v494
      %v527 = vpack.c.bf16 %v524, %v496
      %528 = vst [vmem:[%s239] sm:$0xff] %v526
      %529 = vst [vmem:[%s239 + $0x8] sm:$0xff] %v527
      %v530 = vadd.f32 %v494, %v496
      %v531 = vrot.slane %v530, 4
      %v532 = vadd.f32 %v530, %v531
      %v533 = vrot.slane %v532, 2
      %v534 = vadd.f32 %v532, %v533
      %v535 = vrot.slane %v534, 1
      %v536 = vadd.f32 %v534, %v535
      %v537 = vadd.f32 %v522, %v524
      %v538 = vrot.slane %v537, 4
      %v539 = vadd.f32 %v537, %v538
      %v540 = vrot.slane %v539, 2
      %v541 = vadd.f32 %v539, %v540
      %v542 = vrot.slane %v541, 1
      %v543 = vadd.f32 %v541, %v542
      %v544 = vmul.f32 %v494, %v494
      %v545 = vmul.f32 %v522, %v522
      %v546 = vmul.f32 %v496, %v496
      %v547 = vmul.f32 %v524, %v524
      %v548 = vadd.f32 %v544, %v546
      %v549 = vrot.slane %v548, 4
      %v550 = vadd.f32 %v548, %v549
      %v551 = vrot.slane %v550, 2
      %v552 = vadd.f32 %v550, %v551
      %v553 = vrot.slane %v552, 1
      %v554 = vadd.f32 %v552, %v553
      %v555 = vadd.f32 %v545, %v547
      %v556 = vrot.slane %v555, 4
      %v557 = vadd.f32 %v555, %v556
      %v558 = vrot.slane %v557, 2
      %v559 = vadd.f32 %v557, %v558
      %v560 = vrot.slane %v559, 1
      %v561 = vadd.f32 %v559, %v560
      %vm562 = vcmask 1040384
      %v563 = vsel %vm562, %v536, %v554
      %v564 = vsel %vm562, %v543, %v561
      %v567 = vrot.slane %v564, 6
      %vm568 = vcmask 1041408
      %v569 = vsel %vm568, %v563, %v567
      %571 = vst [vmem:[%s245] sm:$0xf] %v569
      %s572 = smul.u32 2, %s17
      %p573 = scmp.lt.s32.totalorder %s572, 7
      %s574 = scalar_select %p573, %s572, 7
      %s575 = smul.addr %s574, 2
      %s576 = smul.addr %s575, 4
      %s577 = scalar_lea.vmem %s4, %s576
      %p578 = scmp.lt.s32.totalorder %s17, 3
      %s579 = scalar_select %p578, %s17, 3
      %s580 = smul.addr %s579, 2
      %s581 = smul.addr %s580, 2
      %s582 = scalar_lea.vmem %s5, %s581
      // Predicated region
      $region37: #{projection_mlp_forward.5} parent=35 // pred_check
        %p583 = pneg %p124
      $region38: #{projection_mlp_forward.5} parent=35 // pred_check_branch
        %585 = sbr.rel (%p583) target = $region40
      $region39: #{projection_mlp_forward.5} parent=35 // pred_region
        %s586 = smul.u32 2, %s17
      $region40: #{projection_mlp_forward.5} parent=35 // pred_fallthru
        _
      // Predicated region
      $region41: #{projection_mlp_forward.5} parent=35 // pred_check
        %p587 = pneg %p150
      $region42: #{projection_mlp_forward.5} parent=35 // pred_check_branch
        %589 = sbr.rel (%p587) target = $region44
      $region43: #{projection_mlp_forward.5} parent=35 // pred_region
        _
      $region44: #{projection_mlp_forward.5} parent=35 // pred_fallthru
        _
    $region36: #{projection_mlp_forward.5} parent=5 // pred_fallthru
      _
    %p590 = scmp.le.s32.totalorder 2, %s12
    // Predicated region
    $region45: #{projection_mlp_forward.5} parent=5 // pred_check
      %p591 = pneg %p590
    $region46: #{projection_mlp_forward.5} parent=5 // pred_check_branch
      %593 = sbr.rel (%p591) target = $region48
    $region47: #{projection_mlp_forward.5} parent=5 // pred_region
      %s594 = ssub.s32 %s12, 2
      // Predicated region
      $region49: #{projection_mlp_forward.5} parent=47 // pred_check
        %p595 = pneg %p130
      $region50: #{projection_mlp_forward.5} parent=47 // pred_check_branch
        %597 = sbr.rel (%p595) target = $region52
      $region51: #{projection_mlp_forward.5} parent=47 // pred_region
        %s598 = smul.u32 2, %s18
        %p599 = scmp.lt.s32.totalorder %s598, 7
        %s600 = scalar_select %p599, %s598, 7
        %s601 = smul.addr %s600, 2
        %s602 = smul.addr %s601, 4
        %s603 = scalar_lea.vmem %s4, %s602
      $region52: #{projection_mlp_forward.5} parent=47 // pred_fallthru
        _
      // Predicated region
      $region53: #{projection_mlp_forward.5} parent=47 // pred_check
        %p604 = pneg %p156
      $region54: #{projection_mlp_forward.5} parent=47 // pred_check_branch
        %606 = sbr.rel (%p604) target = $region56
      $region55: #{projection_mlp_forward.5} parent=47 // pred_region
        %p607 = scmp.lt.s32.totalorder %s18, 3
        %s608 = scalar_select %p607, %s18, 3
        %s609 = smul.addr %s608, 2
        %s610 = smul.addr %s609, 2
        %s611 = scalar_lea.vmem %s5, %s610
      $region56: #{projection_mlp_forward.5} parent=47 // pred_fallthru
        _
    $region48: #{projection_mlp_forward.5} parent=5 // pred_fallthru
      _
  $region6: #{projection_mlp_forward.5} parent=0 // loop_footer
    %s16 = sadd.s32 1, %s12
  $region7: #{projection_mlp_forward.5} parent=0 // loop_footer_branch
    %11 = sbr.rel target = $region3
  $region8: #{projection_mlp_forward.5} parent=0 // loop_exit
    _

</llo_original>
